<compile_context>
chip_gen: v5e
topology: v5e:2x2
jax: 0.10.0
libtpu: 0.0.40
codegen_flags: <defaults>
</compile_context>

<pallas_src>
from functools import partial

import jax
import jax.numpy as jnp
from jax.experimental import pallas as pl
from jax.experimental.pallas import tpu as pltpu


def _vmem_limit_bytes():
    """Generation-aware scoped-VMEM request (v7x has 64 MiB, v5e/v6e 128 MiB)."""
    try:
        cap = int(pltpu.get_tpu_info().vmem_capacity_bytes)
    except Exception:
        cap = 64 * 1024 * 1024
    return min(cap * 3 // 4, 100 * 1024 * 1024)


_VMEM_LIMIT = _vmem_limit_bytes()
# Bigger row tiles only where VMEM allows it. Activations stay f32 between
# kernels, so the minimum sublane tile is 8 (bf16 weights are full-array blocks
# and exempt from the (8,128) divisibility rule).
_ROW_TILES = ((1024,) if _VMEM_LIMIT > 80 * 1024 * 1024 else ()) + (
    512, 256, 128, 64, 32, 16, 8)

_SQRT_2_OVER_PI = 0.7978845608028654


def _pick_tile(dim, candidates):
    """Largest candidate that evenly divides `dim`, else the full dim."""
    for c in candidates:
        if dim % c == 0:
            return c
    return dim


def _row_plan(m):
    """Return (row_tile, padded_rows) so padded_rows % row_tile == 0 and the
    M axis stays pipelined even for non-divisible M (e.g. B*197)."""
    for t in _ROW_TILES:
        if m % t == 0:
            return t, m
    t = 256 if m > 256 else 8 * ((m + 7) // 8)
    return t, t * ((m + t - 1) // t)


def _pad_rows(x, mp):
    m = x.shape[0]
    return x if mp == m else jnp.pad(x, ((0, mp - m), (0, 0)))


def _gelu_tanh(y):
    # tanh-form GELU (EUP tanh; guaranteed Mosaic lowering).
    # TODO(synk): PyTorch nn.GELU default is erf-exact; swap in the erf form if
    # Mosaic erf lowering is available on the target.
    return 0.5 * y * (1.0 + jnp.tanh(_SQRT_2_OVER_PI * (y + 0.044715 * y * y * y)))


def _layernorm_f32(x, g_ref, b_ref, eps):
    mean = jnp.mean(x, axis=-1, keepdims=True)
    xc = x - mean
    var = jnp.mean(xc * xc, axis=-1, keepdims=True)
    return (xc * jax.lax.rsqrt(var + eps) * g_ref[...].astype(jnp.float32)
            + b_ref[...].astype(jnp.float32))


# ---------------------------------------------------------------------------
# Kernel 1: fused LayerNorm + linear       qkv = LN1(h) @ W + b
# ---------------------------------------------------------------------------
def _ln_linear_kernel(x_ref, g_ref, b_ref, w_ref, bias_ref, o_ref, *, eps):
    xn = _layernorm_f32(x_ref[...].astype(jnp.float32), g_ref, b_ref, eps)
    y = jnp.dot(xn.astype(w_ref.dtype), w_ref[...],
                preferred_element_type=jnp.float32)
    o_ref[...] = (y + bias_ref[...].astype(jnp.float32)).astype(o_ref.dtype)


def pallas_ln_linear(x, gamma, beta, w, b, eps=1e-6):
    m, k = x.shape
    kw, nout = w.shape
    assert k == kw and b.shape == (1, nout)
    tm, mp = _row_plan(m)
    xp = _pad_rows(x, mp)
    out = pl.pallas_call(
        partial(_ln_linear_kernel, eps=eps),
        out_shape=jax.ShapeDtypeStruct((mp, nout), x.dtype),
        grid_spec=pltpu.PrefetchScalarGridSpec(
            num_scalar_prefetch=0,
            grid=(mp // tm,),
            in_specs=[
                pl.BlockSpec((tm, k), lambda i: (i, 0)),
                pl.BlockSpec((1, k), lambda i: (0, 0)),
                pl.BlockSpec((1, k), lambda i: (0, 0)),
                # TODO(synk): tile K/Nout for very large embed dims (>~1536).
                pl.BlockSpec((k, nout), lambda i: (0, 0)),
                pl.BlockSpec((1, nout), lambda i: (0, 0)),
            ],
            out_specs=pl.BlockSpec((tm, nout), lambda i: (i, 0)),
        ),
        compiler_params=pltpu.CompilerParams(
            dimension_semantics=("parallel",),
            vmem_limit_bytes=_VMEM_LIMIT,
        ),
    )(xp, gamma, beta, w, b)
    return out if mp == m else out[:m]


# ---------------------------------------------------------------------------
# Kernel 2: fused attention + output projection + residual
#   qkv: (B, N, 3C) laid out as [q(H,D) | k(H,D) | v(H,D)] on the last dim.
#   One contiguous (1, N, 3C) DMA per batch; q/k/v are lane slices in VMEM.
#   Output projection is folded per head so no (H,N,D)->(N,H,D) relayouts.
# ---------------------------------------------------------------------------
def _attn_proj_kernel(qkv_ref, res_ref, pw_ref, pb_ref, o_ref, *, num_heads, tq):
    c = pw_ref.shape[0]
    d = c // num_heads
    cd = pw_ref.dtype
    row0 = pl.multiple_of(pl.program_id(1) * tq, tq)

    acc = jnp.zeros((tq, c), jnp.float32)
    for h in range(num_heads):                        # static unroll over heads
        lo = h * d
        qh = qkv_ref[0, pl.ds(row0, tq), lo:lo + d].astype(cd)          # (tq, D)
        kh = qkv_ref[0, :, c + lo:c + lo + d].astype(cd)                # (N, D)
        vh = qkv_ref[0, :, 2 * c + lo:2 * c + lo + d].astype(cd)        # (N, D)
        # "NT" contraction: no materialized k.T; softmax scale pre-folded into
        # the q rows of qkv_w / qkv_b.
        s = jax.lax.dot_general(qh, kh, (((1,), (1,)), ((), ())),
                                preferred_element_type=jnp.float32)     # (tq, N)
        s = s - jnp.max(s, axis=-1, keepdims=True)
        p = jnp.exp(s)
        p = p * pl.reciprocal(jnp.sum(p, axis=-1, keepdims=True), approx=True)
        oh = jnp.dot(p.astype(cd), vh, preferred_element_type=jnp.float32)
        # fold the projection per head: heads re-assembled by MXU accumulation.
        acc = acc + jnp.dot(oh.astype(cd), pw_ref[lo:lo + d, :],
                            preferred_element_type=jnp.float32)          # (tq, C)

    y = acc + pb_ref[...].astype(jnp.float32) + res_ref[0].astype(jnp.float32)
    o_ref[0] = y.astype(o_ref.dtype)


def pallas_attention_proj(qkv, h, proj_w, proj_b, num_heads):
    B, N, c3 = qkv.shape
    c = c3 // 3
    assert proj_w.shape == (c, c) and h.shape == (B, N, c)
    tq = _pick_tile(N, (256, 128, 64, 32, 16, 8))     # falls back to full N
    nq = N // tq
    # TODO(synk): flash (KV-tiled online-softmax) grid for long sequences.
    return pl.pallas_call(
        partial(_attn_proj_kernel, num_heads=num_heads, tq=tq),
        out_shape=jax.ShapeDtypeStruct((B, N, c), h.dtype),
        grid_spec=pltpu.PrefetchScalarGridSpec(
            num_scalar_prefetch=0,
            grid=(B, nq),
            in_specs=[
                pl.BlockSpec((1, N, c3), lambda b, q: (b, 0, 0)),   # one qkv DMA
                pl.BlockSpec((1, tq, c), lambda b, q: (b, q, 0)),   # residual rows
                pl.BlockSpec((c, c), lambda b, q: (0, 0)),
                pl.BlockSpec((1, c), lambda b, q: (0, 0)),
            ],
            out_specs=pl.BlockSpec((1, tq, c), lambda b, q: (b, q, 0)),
        ),
        compiler_params=pltpu.CompilerParams(
            dimension_semantics=("parallel", "parallel"),
            vmem_limit_bytes=_VMEM_LIMIT,
        ),
    )(qkv, h, proj_w, proj_b)


# ---------------------------------------------------------------------------
# Kernel 3: fused LayerNorm + MLP + residual
#   h_out = h + fc2(GELU(fc1(LN2(h))))  — the (tm, 4C) intermediate never
#   touches HBM.
# ---------------------------------------------------------------------------
def _ln_mlp_kernel(x_ref, g_ref, b_ref, w1_ref, b1_ref, w2_ref, b2_ref, o_ref,
                   *, eps):
    x = x_ref[...].astype(jnp.float32)
    xn = _layernorm_f32(x, g_ref, b_ref, eps)
    h1 = jnp.dot(xn.astype(w1_ref.dtype), w1_ref[...],
                 preferred_element_type=jnp.float32)
    h1 = _gelu_tanh(h1 + b1_ref[...].astype(jnp.float32))
    y = jnp.dot(h1.astype(w2_ref.dtype), w2_ref[...],
                preferred_element_type=jnp.float32)
    y = y + b2_ref[...].astype(jnp.float32) + x        # fused residual
    o_ref[...] = y.astype(o_ref.dtype)


def pallas_ln_mlp(x, gamma, beta, w1, b1, w2, b2, eps=1e-6):
    m, c = x.shape
    hid = w1.shape[1]
    assert w1.shape == (c, hid) and w2.shape == (hid, c)
    tm, mp = _row_plan(m)
    xp = _pad_rows(x, mp)
    out = pl.pallas_call(
        partial(_ln_mlp_kernel, eps=eps),
        out_shape=jax.ShapeDtypeStruct((mp, c), x.dtype),
        grid_spec=pltpu.PrefetchScalarGridSpec(
            num_scalar_prefetch=0,
            grid=(mp // tm,),
            in_specs=[
                pl.BlockSpec((tm, c), lambda i: (i, 0)),
                pl.BlockSpec((1, c), lambda i: (0, 0)),
                pl.BlockSpec((1, c), lambda i: (0, 0)),
                pl.BlockSpec((c, hid), lambda i: (0, 0)),
                pl.BlockSpec((1, hid), lambda i: (0, 0)),
                pl.BlockSpec((hid, c), lambda i: (0, 0)),
                pl.BlockSpec((1, c), lambda i: (0, 0)),
            ],
            out_specs=pl.BlockSpec((tm, c), lambda i: (i, 0)),
        ),
        compiler_params=pltpu.CompilerParams(
            dimension_semantics=("parallel",),
            vmem_limit_bytes=_VMEM_LIMIT,
        ),
    )(xp, gamma, beta, w1, b1, w2, b2)
    return out if mp == m else out[:m]


# ---------------------------------------------------------------------------
# Kernel 4: standalone LayerNorm (final `norm` only), rows tiled.
# ---------------------------------------------------------------------------
def _layernorm_kernel(x_ref, g_ref, b_ref, o_ref, *, eps):
    o_ref[...] = _layernorm_f32(x_ref[...].astype(jnp.float32),
                                g_ref, b_ref, eps).astype(o_ref.dtype)


def pallas_layernorm(x, gamma, beta, eps=1e-6):
    m, c = x.shape
    tm, mp = _row_plan(m)
    xp = _pad_rows(x, mp)
    out = pl.pallas_call(
        partial(_layernorm_kernel, eps=eps),
        out_shape=jax.ShapeDtypeStruct((mp, c), x.dtype),
        grid_spec=pltpu.PrefetchScalarGridSpec(
            num_scalar_prefetch=0,
            grid=(mp // tm,),
            in_specs=[
                pl.BlockSpec((tm, c), lambda i: (i, 0)),
                pl.BlockSpec((1, c), lambda i: (0, 0)),
                pl.BlockSpec((1, c), lambda i: (0, 0)),
            ],
            out_specs=pl.BlockSpec((tm, c), lambda i: (i, 0)),
        ),
        compiler_params=pltpu.CompilerParams(
            dimension_semantics=("parallel",),
            vmem_limit_bytes=_VMEM_LIMIT,
        ),
    )(xp, gamma, beta)
    return out if mp == m else out[:m]


# ---------------------------------------------------------------------------
# Full IntraTransformer forward (Pallas kernels)
# ---------------------------------------------------------------------------
def intra_transformer_forward(x, kp, *, num_heads, eps=1e-6):
    B, N, C = x.shape
    h = (x + kp["pos_embed"]).reshape(B * N, C)        # pos_drop ratio 0.0
    for blk in kp["blocks"]:
        # LN1 fused into the qkv matmul (softmax scale pre-folded into weights)
        qkv = pallas_ln_linear(h, blk["norm1_g"], blk["norm1_b"],
                               blk["qkv_w"], blk["qkv_b"], eps=eps)   # (M, 3C)
        # attention + proj + residual fused; single contiguous qkv DMA per batch
        h = pallas_attention_proj(qkv.reshape(B, N, 3 * C),
                                  h.reshape(B, N, C),
                                  blk["proj_w"], blk["proj_b"],
                                  num_heads).reshape(B * N, C)
        # LN2 + fc1 + GELU + fc2 + residual fused; 4C intermediate stays in VMEM
        h = pallas_ln_mlp(h, blk["norm2_g"], blk["norm2_b"],
                          blk["fc1_w"], blk["fc1_b"],
                          blk["fc2_w"], blk["fc2_b"], eps=eps)
    out = pallas_layernorm(h, kp["norm_g"], kp["norm_b"], eps)
    return out.reshape(B, N, C)


# ---------------------------------------------------------------------------
# Parameters: PyTorch-layout init + one-time conversion to kernel layout
# ---------------------------------------------------------------------------
def init_params(key, num_features, embed_dim, depth, mlp_ratio=4.0):
    hidden = int(embed_dim * mlp_ratio)
    keys = iter(jax.random.split(key, depth * 12 + 3))

    def w(shape, std=0.05):
        return std * jax.random.normal(next(keys), shape, jnp.float32)

    tp = {"pos_embed": w((1, num_features, embed_dim), 0.02), "blocks": []}
    for _ in range(depth):
        tp["blocks"].append({
            "norm1_g": 1.0 + w((embed_dim,), 0.1),
            "norm1_b": w((embed_dim,), 0.02),
            "qkv_w": w((3 * embed_dim, embed_dim)),     # PyTorch (out, in)
            "qkv_b": w((3 * embed_dim,), 0.02),         # qkv_bias=True
            "proj_w": w((embed_dim, embed_dim)),
            "proj_b": w((embed_dim,), 0.02),
            "norm2_g": 1.0 + w((embed_dim,), 0.1),
            "norm2_b": w((embed_dim,), 0.02),
            "fc1_w": w((hidden, embed_dim)),
            "fc1_b": w((hidden,), 0.02),
            "fc2_w": w((embed_dim, hidden)),
            "fc2_b": w((embed_dim,), 0.02),
        })
    tp["norm_g"] = 1.0 + w((embed_dim,), 0.1)
    tp["norm_b"] = w((embed_dim,), 0.02)
    return tp


def prepare_params(tp, num_heads, param_dtype=jnp.float32):
    """One-time conversion (outside the hot path):
      - transpose weights to (in, out) and optionally cast to bf16 (MXU path);
      - fold the softmax scale into the q rows of qkv_w / qkv_b;
      - reshape vectors to (1, dim) for lane-dense kernel access.
    LayerNorm params / biases / pos_embed stay f32 (elementwise math is f32)."""
    row = lambda v: v.reshape(1, -1)
    C = tp["pos_embed"].shape[-1]
    scale = float(C // num_heads) ** -0.5
    kp = {"pos_embed": tp["pos_embed"], "norm_g": row(tp["norm_g"]),
          "norm_b": row(tp["norm_b"]), "blocks": []}
    for blk in tp["blocks"]:
        qkv_w = blk["qkv_w"].T                       # (C, 3C)
        qkv_w = qkv_w.at[:, :C].multiply(scale)      # fold scale into q columns
        qkv_b = blk["qkv_b"].at[:C].multiply(scale)
        kp["blocks"].append({
            "norm1_g": row(blk["norm1_g"]), "norm1_b": row(blk["norm1_b"]),
            "norm2_g": row(blk["norm2_g"]), "norm2_b": row(blk["norm2_b"]),
            "qkv_w": qkv_w.astype(param_dtype), "qkv_b": row(qkv_b),
            "proj_w": blk["proj_w"].T.astype(param_dtype), "proj_b": row(blk["proj_b"]),
            "fc1_w": blk["fc1_w"].T.astype(param_dtype), "fc1_b": row(blk["fc1_b"]),
            "fc2_w": blk["fc2_w"].T.astype(param_dtype), "fc2_b": row(blk["fc2_b"]),
        })
    return kp


# ---------------------------------------------------------------------------
# Pure-JAX reference mirroring the PyTorch module (source of truth)
# ---------------------------------------------------------------------------
def _layernorm_ref(x, g, b, eps):
    m = jnp.mean(x, axis=-1, keepdims=True)
    v = jnp.mean((x - m) ** 2, axis=-1, keepdims=True)
    return (x - m) / jnp.sqrt(v + eps) * g + b


def reference_forward(x, tp, num_heads, eps=1e-6):
    B, N, C = x.shape
    H = num_heads
    D = C // H
    scale = D ** (-0.5)
    h = x + tp["pos_embed"]
    for blk in tp["blocks"]:
        y = _layernorm_ref(h, blk["norm1_g"], blk["norm1_b"], eps)
        qkv = y @ blk["qkv_w"].T + blk["qkv_b"]
        qkv = qkv.reshape(B, N, 3, H, D).transpose(2, 0, 3, 1, 4)
        q, k, v = qkv[0], qkv[1], qkv[2]
        attn = (q @ jnp.swapaxes(k, -2, -1)) * scale
        attn = jax.nn.softmax(attn, axis=-1)
        o = (attn @ v).transpose(0, 2, 1, 3).reshape(B, N, C)
        h = h + (o @ blk["proj_w"].T + blk["proj_b"])
        y = _layernorm_ref(h, blk["norm2_g"], blk["norm2_b"], eps)
        m_ = jax.nn.gelu(y @ blk["fc1_w"].T + blk["fc1_b"], approximate=False)
        h = h + (m_ @ blk["fc2_w"].T + blk["fc2_b"])
    return _layernorm_ref(h, tp["norm_g"], tp["norm_b"], eps)


if __name__ == "__main__":
    B = 2
    num_features = 16      # sequence length N (small test shape)
    embed_dim = 128        # channels C, kept lane-dense (multiple of 128)
    depth = 2
    num_heads = 1          # IntraTransformer default

    key = jax.random.PRNGKey(0)
    k_x, k_p = jax.random.split(key)
    x = jax.random.normal(k_x, (B, num_features, embed_dim), dtype=jnp.float32)

    torch_params = init_params(k_p, num_features, embed_dim, depth)
    y_ref = reference_forward(x, torch_params, num_heads)

    fwd = jax.jit(partial(intra_transformer_forward, num_heads=num_heads))

    # f32-weight path: tight correctness check (tolerance covers the
    # approx-reciprocal softmax + tanh-GELU vs exact erf-GELU).
    kp_f32 = prepare_params(torch_params, num_heads, jnp.float32)
    y = jax.block_until_ready(fwd(x, kp_f32))
    assert y.shape == (B, num_features, embed_dim)
    assert jnp.allclose(y, y_ref, atol=5e-3, rtol=5e-3), (
        "f32 mismatch vs reference: max abs err "
        f"{float(jnp.max(jnp.abs(y - y_ref)))}")

    # bf16-weight path (MXU-friendly operands, f32 accumulation): looser check.
    kp_bf16 = prepare_params(torch_params, num_heads, jnp.bfloat16)
    y_bf = jax.block_until_ready(fwd(x, kp_bf16))
    assert jnp.allclose(y_bf, y_ref, atol=8e-2, rtol=8e-2), (
        "bf16 mismatch vs reference: max abs err "
        f"{float(jnp.max(jnp.abs(y_bf - y_ref)))}")

    print("KERNEL_OK")
</pallas_src>

<mosaic_0001>
module attributes {stable_mosaic.version = 11 : i64} {
  func.func @_ln_linear_kernel(%arg0: i32, %arg1: memref<32x128xf32, #tpu.memory_space<vmem>>, %arg2: memref<1x128xf32, #tpu.memory_space<vmem>>, %arg3: memref<1x128xf32, #tpu.memory_space<vmem>>, %arg4: memref<128x384xf32, #tpu.memory_space<vmem>>, %arg5: memref<1x384xf32, #tpu.memory_space<vmem>>, %arg6: memref<32x384xf32, #tpu.memory_space<vmem>>) attributes {dimension_semantics = [#tpu.dimension_semantics<parallel>], iteration_bounds = array<i64: 1>, scalar_prefetch = 0 : i64, scratch_operands = 0 : i64, tpu.core_type = #tpu.core_type<tc>, window_params = [{transform_indices = @transform_0, window_bounds = array<i64: 32, 128>}, {pipeline_mode = #tpu.pipeline_mode<synchronous>, transform_indices = @transform_1, window_bounds = array<i64: 1, 128>}, {pipeline_mode = #tpu.pipeline_mode<synchronous>, transform_indices = @transform_2, window_bounds = array<i64: 1, 128>}, {pipeline_mode = #tpu.pipeline_mode<synchronous>, transform_indices = @transform_3, window_bounds = array<i64: 128, 384>}, {pipeline_mode = #tpu.pipeline_mode<synchronous>, transform_indices = @transform_4, window_bounds = array<i64: 1, 384>}, {transform_indices = @transform_5, window_bounds = array<i64: 32, 384>}]} {
    %c0 = arith.constant 0 : index
    %c0_0 = arith.constant 0 : index
    %0 = vector.load %arg1[%c0, %c0_0] : memref<32x128xf32, #tpu.memory_space<vmem>>, vector<32x128xf32>
    %cst = arith.constant dense<0.000000e+00> : vector<32xf32>
    %1 = vector.multi_reduction <add>, %0, %cst [1] : vector<32x128xf32> to vector<32xf32>
    %2 = vector.shape_cast %1 : vector<32xf32> to vector<32x1xf32>
    %cst_1 = arith.constant 1.280000e+02 : f32
    %3 = vector.broadcast %cst_1 : f32 to vector<32x1xf32>
    %4 = arith.divf %2, %3 : vector<32x1xf32>
    %5 = vector.broadcast %4 : vector<32x1xf32> to vector<32x128xf32>
    %6 = arith.subf %0, %5 : vector<32x128xf32>
    %7 = arith.mulf %6, %6 : vector<32x128xf32>
    %cst_2 = arith.constant dense<0.000000e+00> : vector<32xf32>
    %8 = vector.multi_reduction <add>, %7, %cst_2 [1] : vector<32x128xf32> to vector<32xf32>
    %9 = vector.shape_cast %8 : vector<32xf32> to vector<32x1xf32>
    %cst_3 = arith.constant 1.280000e+02 : f32
    %10 = vector.broadcast %cst_3 : f32 to vector<32x1xf32>
    %11 = arith.divf %9, %10 : vector<32x1xf32>
    %cst_4 = arith.constant 9.99999997E-7 : f32
    %12 = vector.broadcast %cst_4 : f32 to vector<32x1xf32>
    %13 = arith.addf %11, %12 : vector<32x1xf32>
    %14 = math.rsqrt %13 : vector<32x1xf32>
    %15 = vector.broadcast %14 : vector<32x1xf32> to vector<32x128xf32>
    %16 = arith.mulf %6, %15 : vector<32x128xf32>
    %c0_5 = arith.constant 0 : index
    %c0_6 = arith.constant 0 : index
    %17 = vector.load %arg2[%c0_5, %c0_6] : memref<1x128xf32, #tpu.memory_space<vmem>>, vector<1x128xf32>
    %18 = vector.broadcast %17 : vector<1x128xf32> to vector<32x128xf32>
    %19 = arith.mulf %16, %18 : vector<32x128xf32>
    %c0_7 = arith.constant 0 : index
    %c0_8 = arith.constant 0 : index
    %20 = vector.load %arg3[%c0_7, %c0_8] : memref<1x128xf32, #tpu.memory_space<vmem>>, vector<1x128xf32>
    %21 = vector.broadcast %20 : vector<1x128xf32> to vector<32x128xf32>
    %22 = arith.addf %19, %21 : vector<32x128xf32>
    %c0_9 = arith.constant 0 : index
    %c0_10 = arith.constant 0 : index
    %23 = vector.load %arg4[%c0_9, %c0_10] : memref<128x384xf32, #tpu.memory_space<vmem>>, vector<128x384xf32>
    %cst_11 = arith.constant dense<0.000000e+00> : vector<32x384xf32>
    %24 = tpu.matmul %22, %23, %cst_11 {dimension_numbers = #tpu.dot_dimension_numbers<[1], [0], [0], [1], [0, 0, 1, 1], [], []>} : vector<32x128xf32>, vector<128x384xf32>, vector<32x384xf32> -> vector<32x384xf32>
    %c0_12 = arith.constant 0 : index
    %c0_13 = arith.constant 0 : index
    %25 = vector.load %arg5[%c0_12, %c0_13] : memref<1x384xf32, #tpu.memory_space<vmem>>, vector<1x384xf32>
    %26 = vector.broadcast %25 : vector<1x384xf32> to vector<32x384xf32>
    %27 = arith.addf %24, %26 : vector<32x384xf32>
    %c0_14 = arith.constant 0 : index
    %c0_15 = arith.constant 0 : index
    %28 = vector.load %arg6[%c0_14, %c0_15] : memref<32x384xf32, #tpu.memory_space<vmem>>, vector<32x384xf32>
    tpu.vector_store %arg6[%c0_14, %c0_15], %27 {strides = array<i32>} : memref<32x384xf32, #tpu.memory_space<vmem>>, vector<32x384xf32>,
    return
  }
  func.func @transform_0(%arg0: i32) -> (i32, i32) {
    %c0_i32 = arith.constant 0 : i32
    %c0_i32_0 = arith.constant 0 : i32
    return %arg0, %c0_i32 : i32, i32
  }
  func.func @transform_1(%arg0: i32) -> (i32, i32) {
    %c0_i32 = arith.constant 0 : i32
    %c0_i32_0 = arith.constant 0 : i32
    %c0_i32_1 = arith.constant 0 : i32
    return %c0_i32, %c0_i32_0 : i32, i32
  }
  func.func @transform_2(%arg0: i32) -> (i32, i32) {
    %c0_i32 = arith.constant 0 : i32
    %c0_i32_0 = arith.constant 0 : i32
    %c0_i32_1 = arith.constant 0 : i32
    return %c0_i32, %c0_i32_0 : i32, i32
  }
  func.func @transform_3(%arg0: i32) -> (i32, i32) {
    %c0_i32 = arith.constant 0 : i32
    %c0_i32_0 = arith.constant 0 : i32
    %c0_i32_1 = arith.constant 0 : i32
    return %c0_i32, %c0_i32_0 : i32, i32
  }
  func.func @transform_4(%arg0: i32) -> (i32, i32) {
    %c0_i32 = arith.constant 0 : i32
    %c0_i32_0 = arith.constant 0 : i32
    %c0_i32_1 = arith.constant 0 : i32
    return %c0_i32, %c0_i32_0 : i32, i32
  }
  func.func @transform_5(%arg0: i32) -> (i32, i32) {
    %c0_i32 = arith.constant 0 : i32
    %c0_i32_0 = arith.constant 0 : i32
    return %arg0, %c0_i32 : i32, i32
  }
}

module attributes {stable_mosaic.version = 11 : i64} {
  func.func @_attn_proj_kernel(%arg0: i32, %arg1: i32, %arg2: memref<1x16x384xf32, #tpu.memory_space<vmem>>, %arg3: memref<1x16x128xf32, #tpu.memory_space<vmem>>, %arg4: memref<128x128xf32, #tpu.memory_space<vmem>>, %arg5: memref<1x128xf32, #tpu.memory_space<vmem>>, %arg6: memref<1x16x128xf32, #tpu.memory_space<vmem>>) attributes {dimension_semantics = [#tpu.dimension_semantics<parallel>, #tpu.dimension_semantics<parallel>], iteration_bounds = array<i64: 2, 1>, scalar_prefetch = 0 : i64, scratch_operands = 0 : i64, tpu.core_type = #tpu.core_type<tc>, window_params = [{transform_indices = @transform_0, window_bounds = array<i64: 1, 16, 384>}, {transform_indices = @transform_1, window_bounds = array<i64: 1, 16, 128>}, {pipeline_mode = #tpu.pipeline_mode<synchronous>, transform_indices = @transform_2, window_bounds = array<i64: 128, 128>}, {pipeline_mode = #tpu.pipeline_mode<synchronous>, transform_indices = @transform_3, window_bounds = array<i64: 1, 128>}, {transform_indices = @transform_4, window_bounds = array<i64: 1, 16, 128>}]} {
    %c16_i32 = arith.constant 16 : i32
    %0 = arith.muli %arg1, %c16_i32 : i32
    %1 = tpu.assume_multiple %0, 16 : i32
    %cst = arith.constant 0.000000e+00 : f32
    %2 = vector.broadcast %cst : f32 to vector<16x128xf32>
    %c0 = arith.constant 0 : index
    %3 = arith.index_cast %1 : i32 to index
    %c0_0 = arith.constant 0 : index
    %4 = vector.load %arg2[%c0, %3, %c0_0] : memref<1x16x384xf32, #tpu.memory_space<vmem>>, vector<1x16x128xf32>
    %5 = vector.shape_cast %4 : vector<1x16x128xf32> to vector<16x128xf32>
    %c0_1 = arith.constant 0 : index
    %c0_2 = arith.constant 0 : index
    %c128 = arith.constant 128 : index
    %6 = vector.load %arg2[%c0_1, %c0_2, %c128] : memref<1x16x384xf32, #tpu.memory_space<vmem>>, vector<1x16x128xf32>
    %7 = vector.shape_cast %6 : vector<1x16x128xf32> to vector<16x128xf32>
    %c0_3 = arith.constant 0 : index
    %c0_4 = arith.constant 0 : index
    %c256 = arith.constant 256 : index
    %8 = vector.load %arg2[%c0_3, %c0_4, %c256] : memref<1x16x384xf32, #tpu.memory_space<vmem>>, vector<1x16x128xf32>
    %9 = vector.shape_cast %8 : vector<1x16x128xf32> to vector<16x128xf32>
    %cst_5 = arith.constant dense<0.000000e+00> : vector<16x16xf32>
    %10 = tpu.matmul %5, %7, %cst_5 {dimension_numbers = #tpu.dot_dimension_numbers<[1], [1], [0], [0], [0, 0, 1, 0], [], []>} : vector<16x128xf32>, vector<16x128xf32>, vector<16x16xf32> -> vector<16x16xf32>
    %cst_6 = arith.constant dense<0xFF800000> : vector<16xf32>
    %11 = vector.multi_reduction <maximumf>, %10, %cst_6 [1] : vector<16x16xf32> to vector<16xf32>
    %12 = vector.shape_cast %11 : vector<16xf32> to vector<16x1xf32>
    %13 = vector.broadcast %12 : vector<16x1xf32> to vector<16x16xf32>
    %14 = arith.subf %10, %13 : vector<16x16xf32>
    %15 = math.exp %14 : vector<16x16xf32>
    %cst_7 = arith.constant dense<0.000000e+00> : vector<16xf32>
    %16 = vector.multi_reduction <add>, %15, %cst_7 [1] : vector<16x16xf32> to vector<16xf32>
    %17 = vector.shape_cast %16 : vector<16xf32> to vector<16x1xf32>
    %18 = tpu.reciprocal %17 {approx = true} : vector<16x1xf32> -> vector<16x1xf32>
    %19 = vector.broadcast %18 : vector<16x1xf32> to vector<16x16xf32>
    %20 = arith.mulf %15, %19 : vector<16x16xf32>
    %cst_8 = arith.constant dense<0.000000e+00> : vector<16x128xf32>
    %21 = tpu.matmul %20, %9, %cst_8 {dimension_numbers = #tpu.dot_dimension_numbers<[1], [0], [0], [1], [0, 0, 1, 1], [], []>} : vector<16x16xf32>, vector<16x128xf32>, vector<16x128xf32> -> vector<16x128xf32>
    %c0_9 = arith.constant 0 : index
    %c0_10 = arith.constant 0 : index
    %22 = vector.load %arg4[%c0_9, %c0_10] : memref<128x128xf32, #tpu.memory_space<vmem>>, vector<128x128xf32>
    %cst_11 = arith.constant dense<0.000000e+00> : vector<16x128xf32>
    %23 = tpu.matmul %21, %22, %cst_11 {dimension_numbers = #tpu.dot_dimension_numbers<[1], [0], [0], [1], [0, 0, 1, 1], [], []>} : vector<16x128xf32>, vector<128x128xf32>, vector<16x128xf32> -> vector<16x128xf32>
    %24 = arith.addf %2, %23 : vector<16x128xf32>
    %c0_12 = arith.constant 0 : index
    %c0_13 = arith.constant 0 : index
    %25 = vector.load %arg5[%c0_12, %c0_13] : memref<1x128xf32, #tpu.memory_space<vmem>>, vector<1x128xf32>
    %26 = vector.broadcast %25 : vector<1x128xf32> to vector<16x128xf32>
    %27 = arith.addf %24, %26 : vector<16x128xf32>
    %c0_14 = arith.constant 0 : index
    %c0_15 = arith.constant 0 : index
    %c0_16 = arith.constant 0 : index
    %28 = vector.load %arg3[%c0_14, %c0_15, %c0_16] : memref<1x16x128xf32, #tpu.memory_space<vmem>>, vector<1x16x128xf32>
    %29 = vector.shape_cast %28 : vector<1x16x128xf32> to vector<16x128xf32>
    %30 = arith.addf %27, %29 : vector<16x128xf32>
    %c0_17 = arith.constant 0 : index
    %c0_18 = arith.constant 0 : index
    %c0_19 = arith.constant 0 : index
    %31 = vector.load %arg6[%c0_17, %c0_18, %c0_19] : memref<1x16x128xf32, #tpu.memory_space<vmem>>, vector<1x16x128xf32>
    %32 = vector.shape_cast %31 : vector<1x16x128xf32> to vector<16x128xf32>
    %33 = vector.shape_cast %30 : vector<16x128xf32> to vector<1x16x128xf32>
    tpu.vector_store %arg6[%c0_17, %c0_18, %c0_19], %33 {strides = array<i32>} : memref<1x16x128xf32, #tpu.memory_space<vmem>>, vector<1x16x128xf32>,
    return
  }
  func.func @transform_0(%arg0: i32, %arg1: i32) -> (i32, i32, i32) {
    %c0_i32 = arith.constant 0 : i32
    %c0_i32_0 = arith.constant 0 : i32
    %c0_i32_1 = arith.constant 0 : i32
    return %arg0, %c0_i32, %c0_i32_0 : i32, i32, i32
  }
  func.func @transform_1(%arg0: i32, %arg1: i32) -> (i32, i32, i32) {
    %c0_i32 = arith.constant 0 : i32
    %c0_i32_0 = arith.constant 0 : i32
    return %arg0, %arg1, %c0_i32 : i32, i32, i32
  }
  func.func @transform_2(%arg0: i32, %arg1: i32) -> (i32, i32) {
    %c0_i32 = arith.constant 0 : i32
    %c0_i32_0 = arith.constant 0 : i32
    %c0_i32_1 = arith.constant 0 : i32
    return %c0_i32, %c0_i32_0 : i32, i32
  }
  func.func @transform_3(%arg0: i32, %arg1: i32) -> (i32, i32) {
    %c0_i32 = arith.constant 0 : i32
    %c0_i32_0 = arith.constant 0 : i32
    %c0_i32_1 = arith.constant 0 : i32
    return %c0_i32, %c0_i32_0 : i32, i32
  }
  func.func @transform_4(%arg0: i32, %arg1: i32) -> (i32, i32, i32) {
    %c0_i32 = arith.constant 0 : i32
    %c0_i32_0 = arith.constant 0 : i32
    return %arg0, %arg1, %c0_i32 : i32, i32, i32
  }
}

module attributes {stable_mosaic.version = 11 : i64} {
  func.func @_ln_mlp_kernel(%arg0: i32, %arg1: memref<32x128xf32, #tpu.memory_space<vmem>>, %arg2: memref<1x128xf32, #tpu.memory_space<vmem>>, %arg3: memref<1x128xf32, #tpu.memory_space<vmem>>, %arg4: memref<128x512xf32, #tpu.memory_space<vmem>>, %arg5: memref<1x512xf32, #tpu.memory_space<vmem>>, %arg6: memref<512x128xf32, #tpu.memory_space<vmem>>, %arg7: memref<1x128xf32, #tpu.memory_space<vmem>>, %arg8: memref<32x128xf32, #tpu.memory_space<vmem>>) attributes {dimension_semantics = [#tpu.dimension_semantics<parallel>], iteration_bounds = array<i64: 1>, scalar_prefetch = 0 : i64, scratch_operands = 0 : i64, tpu.core_type = #tpu.core_type<tc>, window_params = [{transform_indices = @transform_0, window_bounds = array<i64: 32, 128>}, {pipeline_mode = #tpu.pipeline_mode<synchronous>, transform_indices = @transform_1, window_bounds = array<i64: 1, 128>}, {pipeline_mode = #tpu.pipeline_mode<synchronous>, transform_indices = @transform_2, window_bounds = array<i64: 1, 128>}, {pipeline_mode = #tpu.pipeline_mode<synchronous>, transform_indices = @transform_3, window_bounds = array<i64: 128, 512>}, {pipeline_mode = #tpu.pipeline_mode<synchronous>, transform_indices = @transform_4, window_bounds = array<i64: 1, 512>}, {pipeline_mode = #tpu.pipeline_mode<synchronous>, transform_indices = @transform_5, window_bounds = array<i64: 512, 128>}, {pipeline_mode = #tpu.pipeline_mode<synchronous>, transform_indices = @transform_6, window_bounds = array<i64: 1, 128>}, {transform_indices = @transform_7, window_bounds = array<i64: 32, 128>}]} {
    %c0 = arith.constant 0 : index
    %c0_0 = arith.constant 0 : index
    %0 = vector.load %arg1[%c0, %c0_0] : memref<32x128xf32, #tpu.memory_space<vmem>>, vector<32x128xf32>
    %cst = arith.constant dense<0.000000e+00> : vector<32xf32>
    %1 = vector.multi_reduction <add>, %0, %cst [1] : vector<32x128xf32> to vector<32xf32>
    %2 = vector.shape_cast %1 : vector<32xf32> to vector<32x1xf32>
    %cst_1 = arith.constant 1.280000e+02 : f32
    %3 = vector.broadcast %cst_1 : f32 to vector<32x1xf32>
    %4 = arith.divf %2, %3 : vector<32x1xf32>
    %5 = vector.broadcast %4 : vector<32x1xf32> to vector<32x128xf32>
    %6 = arith.subf %0, %5 : vector<32x128xf32>
    %7 = arith.mulf %6, %6 : vector<32x128xf32>
    %cst_2 = arith.constant dense<0.000000e+00> : vector<32xf32>
    %8 = vector.multi_reduction <add>, %7, %cst_2 [1] : vector<32x128xf32> to vector<32xf32>
    %9 = vector.shape_cast %8 : vector<32xf32> to vector<32x1xf32>
    %cst_3 = arith.constant 1.280000e+02 : f32
    %10 = vector.broadcast %cst_3 : f32 to vector<32x1xf32>
    %11 = arith.divf %9, %10 : vector<32x1xf32>
    %cst_4 = arith.constant 9.99999997E-7 : f32
    %12 = vector.broadcast %cst_4 : f32 to vector<32x1xf32>
    %13 = arith.addf %11, %12 : vector<32x1xf32>
    %14 = math.rsqrt %13 : vector<32x1xf32>
    %15 = vector.broadcast %14 : vector<32x1xf32> to vector<32x128xf32>
    %16 = arith.mulf %6, %15 : vector<32x128xf32>
    %c0_5 = arith.constant 0 : index
    %c0_6 = arith.constant 0 : index
    %17 = vector.load %arg2[%c0_5, %c0_6] : memref<1x128xf32, #tpu.memory_space<vmem>>, vector<1x128xf32>
    %18 = vector.broadcast %17 : vector<1x128xf32> to vector<32x128xf32>
    %19 = arith.mulf %16, %18 : vector<32x128xf32>
    %c0_7 = arith.constant 0 : index
    %c0_8 = arith.constant 0 : index
    %20 = vector.load %arg3[%c0_7, %c0_8] : memref<1x128xf32, #tpu.memory_space<vmem>>, vector<1x128xf32>
    %21 = vector.broadcast %20 : vector<1x128xf32> to vector<32x128xf32>
    %22 = arith.addf %19, %21 : vector<32x128xf32>
    %c0_9 = arith.constant 0 : index
    %c0_10 = arith.constant 0 : index
    %23 = vector.load %arg4[%c0_9, %c0_10] : memref<128x512xf32, #tpu.memory_space<vmem>>, vector<128x512xf32>
    %cst_11 = arith.constant dense<0.000000e+00> : vector<32x512xf32>
    %24 = tpu.matmul %22, %23, %cst_11 {dimension_numbers = #tpu.dot_dimension_numbers<[1], [0], [0], [1], [0, 0, 1, 1], [], []>} : vector<32x128xf32>, vector<128x512xf32>, vector<32x512xf32> -> vector<32x512xf32>
    %c0_12 = arith.constant 0 : index
    %c0_13 = arith.constant 0 : index
    %25 = vector.load %arg5[%c0_12, %c0_13] : memref<1x512xf32, #tpu.memory_space<vmem>>, vector<1x512xf32>
    %26 = vector.broadcast %25 : vector<1x512xf32> to vector<32x512xf32>
    %27 = arith.addf %24, %26 : vector<32x512xf32>
    %cst_14 = arith.constant 5.000000e-01 : f32
    %28 = vector.broadcast %cst_14 : f32 to vector<32x512xf32>
    %29 = arith.mulf %28, %27 : vector<32x512xf32>
    %cst_15 = arith.constant 4.471500e-02 : f32
    %30 = vector.broadcast %cst_15 : f32 to vector<32x512xf32>
    %31 = arith.mulf %30, %27 : vector<32x512xf32>
    %32 = arith.mulf %31, %27 : vector<32x512xf32>
    %33 = arith.mulf %32, %27 : vector<32x512xf32>
    %34 = arith.addf %27, %33 : vector<32x512xf32>
    %cst_16 = arith.constant 0.797884583 : f32
    %35 = vector.broadcast %cst_16 : f32 to vector<32x512xf32>
    %36 = arith.mulf %35, %34 : vector<32x512xf32>
    %37 = math.tanh %36 : vector<32x512xf32>
    %cst_17 = arith.constant 1.000000e+00 : f32
    %38 = vector.broadcast %cst_17 : f32 to vector<32x512xf32>
    %39 = arith.addf %38, %37 : vector<32x512xf32>
    %40 = arith.mulf %29, %39 : vector<32x512xf32>
    %c0_18 = arith.constant 0 : index
    %c0_19 = arith.constant 0 : index
    %41 = vector.load %arg6[%c0_18, %c0_19] : memref<512x128xf32, #tpu.memory_space<vmem>>, vector<512x128xf32>
    %cst_20 = arith.constant dense<0.000000e+00> : vector<32x128xf32>
    %42 = tpu.matmul %40, %41, %cst_20 {dimension_numbers = #tpu.dot_dimension_numbers<[1], [0], [0], [1], [0, 0, 1, 1], [], []>} : vector<32x512xf32>, vector<512x128xf32>, vector<32x128xf32> -> vector<32x128xf32>
    %c0_21 = arith.constant 0 : index
    %c0_22 = arith.constant 0 : index
    %43 = vector.load %arg7[%c0_21, %c0_22] : memref<1x128xf32, #tpu.memory_space<vmem>>, vector<1x128xf32>
    %44 = vector.broadcast %43 : vector<1x128xf32> to vector<32x128xf32>
    %45 = arith.addf %42, %44 : vector<32x128xf32>
    %46 = arith.addf %45, %0 : vector<32x128xf32>
    %c0_23 = arith.constant 0 : index
    %c0_24 = arith.constant 0 : index
    %47 = vector.load %arg8[%c0_23, %c0_24] : memref<32x128xf32, #tpu.memory_space<vmem>>, vector<32x128xf32>
    tpu.vector_store %arg8[%c0_23, %c0_24], %46 {strides = array<i32>} : memref<32x128xf32, #tpu.memory_space<vmem>>, vector<32x128xf32>,
    return
  }
  func.func @transform_0(%arg0: i32) -> (i32, i32) {
    %c0_i32 = arith.constant 0 : i32
    %c0_i32_0 = arith.constant 0 : i32
    return %arg0, %c0_i32 : i32, i32
  }
  func.func @transform_1(%arg0: i32) -> (i32, i32) {
    %c0_i32 = arith.constant 0 : i32
    %c0_i32_0 = arith.constant 0 : i32
    %c0_i32_1 = arith.constant 0 : i32
    return %c0_i32, %c0_i32_0 : i32, i32
  }
  func.func @transform_2(%arg0: i32) -> (i32, i32) {
    %c0_i32 = arith.constant 0 : i32
    %c0_i32_0 = arith.constant 0 : i32
    %c0_i32_1 = arith.constant 0 : i32
    return %c0_i32, %c0_i32_0 : i32, i32
  }
  func.func @transform_3(%arg0: i32) -> (i32, i32) {
    %c0_i32 = arith.constant 0 : i32
    %c0_i32_0 = arith.constant 0 : i32
    %c0_i32_1 = arith.constant 0 : i32
    return %c0_i32, %c0_i32_0 : i32, i32
  }
  func.func @transform_4(%arg0: i32) -> (i32, i32) {
    %c0_i32 = arith.constant 0 : i32
    %c0_i32_0 = arith.constant 0 : i32
    %c0_i32_1 = arith.constant 0 : i32
    return %c0_i32, %c0_i32_0 : i32, i32
  }
  func.func @transform_5(%arg0: i32) -> (i32, i32) {
    %c0_i32 = arith.constant 0 : i32
    %c0_i32_0 = arith.constant 0 : i32
    %c0_i32_1 = arith.constant 0 : i32
    return %c0_i32, %c0_i32_0 : i32, i32
  }
  func.func @transform_6(%arg0: i32) -> (i32, i32) {
    %c0_i32 = arith.constant 0 : i32
    %c0_i32_0 = arith.constant 0 : i32
    %c0_i32_1 = arith.constant 0 : i32
    return %c0_i32, %c0_i32_0 : i32, i32
  }
  func.func @transform_7(%arg0: i32) -> (i32, i32) {
    %c0_i32 = arith.constant 0 : i32
    %c0_i32_0 = arith.constant 0 : i32
    return %arg0, %c0_i32 : i32, i32
  }
}

module attributes {stable_mosaic.version = 11 : i64} {
  func.func @_layernorm_kernel(%arg0: i32, %arg1: memref<32x128xf32, #tpu.memory_space<vmem>>, %arg2: memref<1x128xf32, #tpu.memory_space<vmem>>, %arg3: memref<1x128xf32, #tpu.memory_space<vmem>>, %arg4: memref<32x128xf32, #tpu.memory_space<vmem>>) attributes {dimension_semantics = [#tpu.dimension_semantics<parallel>], iteration_bounds = array<i64: 1>, scalar_prefetch = 0 : i64, scratch_operands = 0 : i64, tpu.core_type = #tpu.core_type<tc>, window_params = [{transform_indices = @transform_0, window_bounds = array<i64: 32, 128>}, {pipeline_mode = #tpu.pipeline_mode<synchronous>, transform_indices = @transform_1, window_bounds = array<i64: 1, 128>}, {pipeline_mode = #tpu.pipeline_mode<synchronous>, transform_indices = @transform_2, window_bounds = array<i64: 1, 128>}, {transform_indices = @transform_3, window_bounds = array<i64: 32, 128>}]} {
    %c0 = arith.constant 0 : index
    %c0_0 = arith.constant 0 : index
    %0 = vector.load %arg1[%c0, %c0_0] : memref<32x128xf32, #tpu.memory_space<vmem>>, vector<32x128xf32>
    %cst = arith.constant dense<0.000000e+00> : vector<32xf32>
    %1 = vector.multi_reduction <add>, %0, %cst [1] : vector<32x128xf32> to vector<32xf32>
    %2 = vector.shape_cast %1 : vector<32xf32> to vector<32x1xf32>
    %cst_1 = arith.constant 1.280000e+02 : f32
    %3 = vector.broadcast %cst_1 : f32 to vector<32x1xf32>
    %4 = arith.divf %2, %3 : vector<32x1xf32>
    %5 = vector.broadcast %4 : vector<32x1xf32> to vector<32x128xf32>
    %6 = arith.subf %0, %5 : vector<32x128xf32>
    %7 = arith.mulf %6, %6 : vector<32x128xf32>
    %cst_2 = arith.constant dense<0.000000e+00> : vector<32xf32>
    %8 = vector.multi_reduction <add>, %7, %cst_2 [1] : vector<32x128xf32> to vector<32xf32>
    %9 = vector.shape_cast %8 : vector<32xf32> to vector<32x1xf32>
    %cst_3 = arith.constant 1.280000e+02 : f32
    %10 = vector.broadcast %cst_3 : f32 to vector<32x1xf32>
    %11 = arith.divf %9, %10 : vector<32x1xf32>
    %cst_4 = arith.constant 9.99999997E-7 : f32
    %12 = vector.broadcast %cst_4 : f32 to vector<32x1xf32>
    %13 = arith.addf %11, %12 : vector<32x1xf32>
    %14 = math.rsqrt %13 : vector<32x1xf32>
    %15 = vector.broadcast %14 : vector<32x1xf32> to vector<32x128xf32>
    %16 = arith.mulf %6, %15 : vector<32x128xf32>
    %c0_5 = arith.constant 0 : index
    %c0_6 = arith.constant 0 : index
    %17 = vector.load %arg2[%c0_5, %c0_6] : memref<1x128xf32, #tpu.memory_space<vmem>>, vector<1x128xf32>
    %18 = vector.broadcast %17 : vector<1x128xf32> to vector<32x128xf32>
    %19 = arith.mulf %16, %18 : vector<32x128xf32>
    %c0_7 = arith.constant 0 : index
    %c0_8 = arith.constant 0 : index
    %20 = vector.load %arg3[%c0_7, %c0_8] : memref<1x128xf32, #tpu.memory_space<vmem>>, vector<1x128xf32>
    %21 = vector.broadcast %20 : vector<1x128xf32> to vector<32x128xf32>
    %22 = arith.addf %19, %21 : vector<32x128xf32>
    %c0_9 = arith.constant 0 : index
    %c0_10 = arith.constant 0 : index
    %23 = vector.load %arg4[%c0_9, %c0_10] : memref<32x128xf32, #tpu.memory_space<vmem>>, vector<32x128xf32>
    tpu.vector_store %arg4[%c0_9, %c0_10], %22 {strides = array<i32>} : memref<32x128xf32, #tpu.memory_space<vmem>>, vector<32x128xf32>,
    return
  }
  func.func @transform_0(%arg0: i32) -> (i32, i32) {
    %c0_i32 = arith.constant 0 : i32
    %c0_i32_0 = arith.constant 0 : i32
    return %arg0, %c0_i32 : i32, i32
  }
  func.func @transform_1(%arg0: i32) -> (i32, i32) {
    %c0_i32 = arith.constant 0 : i32
    %c0_i32_0 = arith.constant 0 : i32
    %c0_i32_1 = arith.constant 0 : i32
    return %c0_i32, %c0_i32_0 : i32, i32
  }
  func.func @transform_2(%arg0: i32) -> (i32, i32) {
    %c0_i32 = arith.constant 0 : i32
    %c0_i32_0 = arith.constant 0 : i32
    %c0_i32_1 = arith.constant 0 : i32
    return %c0_i32, %c0_i32_0 : i32, i32
  }
  func.func @transform_3(%arg0: i32) -> (i32, i32) {
    %c0_i32 = arith.constant 0 : i32
    %c0_i32_0 = arith.constant 0 : i32
    return %arg0, %c0_i32 : i32, i32
  }
}

</mosaic_0001>

<llo_original>
// kernel: intra_transformer_forward.7
$region0: #{intra_transformer_forward.7}
  #allocation0 [shape = 'u32[]', space=smem, size = 0x4, offset = 0x4, fixed_abs, tag = 'smem constant byte address 0x4 - core index']
  #allocation1 [shape = 'u32[72,128]{1,0:T(1,128)}', space=vmem, size = 0x9000, scoped, tag = 'internal scratch']
  %s0 = inlined_call_operand.vmem [shape: f32[32,128], index: 0, kind: input, shape index: {}]
  %s1 = inlined_call_operand.vmem [shape: f32[1,128], index: 1, kind: input, shape index: {}]
  %s2 = inlined_call_operand.vmem [shape: f32[1,128], index: 2, kind: input, shape index: {}]
  %s3 = inlined_call_operand.hbm [shape: f32[128,384], index: 3, kind: input, shape index: {}]
  %s4 = inlined_call_operand.vmem [shape: f32[1,384], index: 4, kind: input, shape index: {}]
  %s5 = inlined_call_operand.vmem [shape: f32[32,384], index: 5, kind: output, shape index: {}]
  %s6 = sld [smem:[#allocation0]]
  $region34: #{intra_transformer_forward.7} parent=0
    _
  %s8 = ssub.s32 1, %s6
  %s9 = scalar_select 0, %s8, %s6
  $region1: #{intra_transformer_forward.7} parent=0
    #allocation2 [shape = 'u8[196608]{0}', space=vmem, size = 0x30000, scoped, tag = 'input window, operand 3, single buffered']
    #allocation3 [shape = 's32[1]{0}', space=sflag, size = 0x4, scoped, tag = 'scoped memory for intra_transformer_forward.7']
    %10 = vsyncpa [#allocation3], 0
    // Predicated region
    $region2: #{intra_transformer_forward.7} parent=1 // pred_check
      _
    $region3: #{intra_transformer_forward.7} parent=1 // pred_check_branch
      %12 = sbr.rel (0) target = $region5
    $region4: #{intra_transformer_forward.7} parent=1 // pred_region
      _
    $region5: #{intra_transformer_forward.7} parent=1 // pred_fallthru
      _
    // Predicated region
    $region6: #{intra_transformer_forward.7} parent=1 // pred_check
      _
    $region7: #{intra_transformer_forward.7} parent=1 // pred_check_branch
      %14 = sbr.rel (0) target = $region9
    $region8: #{intra_transformer_forward.7} parent=1 // pred_region
      _
    $region9: #{intra_transformer_forward.7} parent=1 // pred_fallthru
      _
    // Predicated region
    $region10: #{intra_transformer_forward.7} parent=1 // pred_check
      _
    $region11: #{intra_transformer_forward.7} parent=1 // pred_check_branch
      %16 = sbr.rel (0) target = $region13
    $region12: #{intra_transformer_forward.7} parent=1 // pred_region
      _
    $region13: #{intra_transformer_forward.7} parent=1 // pred_fallthru
      _
    // Predicated region
    $region14: #{intra_transformer_forward.7} parent=1 // pred_check
      _
    $region15: #{intra_transformer_forward.7} parent=1 // pred_check_branch
      %18 = sbr.rel (0) target = $region17
    $region16: #{intra_transformer_forward.7} parent=1 // pred_region
      %20 = vsyncadd [#allocation3], 0
      %s21 = sshll.u32 %s3, 4
      %s22 = int_to_ptr.hbm [resolvable:$true] %s21
      %s23 = sshll.u32 [#allocation2], 4
      %s24 = int_to_ptr.vmem [resolvable:$true] %s23
      %29 = dma.hbm_to_vmem [thread:$0]  %s22, 6144, %s24, [#allocation3], 384, 384, 24
    $region17: #{intra_transformer_forward.7} parent=1 // pred_fallthru
      _
    // Predicated region
    $region18: #{intra_transformer_forward.7} parent=1 // pred_check
      _
    $region19: #{intra_transformer_forward.7} parent=1 // pred_check_branch
      %31 = sbr.rel (0) target = $region21
    $region20: #{intra_transformer_forward.7} parent=1 // pred_region
      _
    $region21: #{intra_transformer_forward.7} parent=1 // pred_fallthru
      _
    // Predicated region
    $region22: #{intra_transformer_forward.7} parent=1 // pred_check
      _
    $region23: #{intra_transformer_forward.7} parent=1 // pred_check_branch
      %33 = sbr.rel (0) target = $region25
    $region24: #{intra_transformer_forward.7} parent=1 // pred_region
      %35 = dma.done [#allocation3], 6144
    $region25: #{intra_transformer_forward.7} parent=1 // pred_fallthru
      _
    %v36 = vld [vmem:[%s0] sm:$0xff]
    %v37 = vld [vmem:[%s0 + $0x8] sm:$0xff]
    %v38 = vld [vmem:[%s0 + $0x10] sm:$0xff]
    %v39 = vld [vmem:[%s0 + $0x18] sm:$0xff]
    %40 = vadd.xlane.f32.xlu0 %v36
    %v41 = vpop.xlane.xlu0 %40
    %42 = vadd.xlane.f32.xlu0 %v37
    %v43 = vpop.xlane.xlu0 %42
    %44 = vadd.xlane.f32.xlu0 %v38
    %v45 = vpop.xlane.xlu0 %44
    %46 = vadd.xlane.f32.xlu0 %v39
    %v47 = vpop.xlane.xlu0 %46
    %v48 = vrcp.pop 128.0
    %v49 = vmul.f32 128.0, %v48
    %v50 = vsub.f32 1.0, %v49
    %v51 = vmul.f32 %v48, %v50
    %v52 = vadd.f32 %v48, %v51
    %vm53 = vweird.f32 %v48
    %v54 = vsel %vm53, %v48, %v52
    %v55 = vmul.f32 %v41, %v54
    %v56 = vmul.f32 %v43, %v54
    %v57 = vmul.f32 %v45, %v54
    %v58 = vmul.f32 %v47, %v54
    %v59 = vsub.f32 %v36, %v55
    %v60 = vsub.f32 %v37, %v56
    %v61 = vsub.f32 %v38, %v57
    %v62 = vsub.f32 %v39, %v58
    %v63 = vmul.f32 %v59, %v59
    %v64 = vmul.f32 %v60, %v60
    %v65 = vmul.f32 %v61, %v61
    %v66 = vmul.f32 %v62, %v62
    %67 = vadd.xlane.f32.xlu0 %v63
    %v68 = vpop.xlane.xlu0 %67
    %69 = vadd.xlane.f32.xlu0 %v64
    %v70 = vpop.xlane.xlu0 %69
    %71 = vadd.xlane.f32.xlu0 %v65
    %v72 = vpop.xlane.xlu0 %71
    %73 = vadd.xlane.f32.xlu0 %v66
    %v74 = vpop.xlane.xlu0 %73
    %v75 = vmul.f32 %v68, %v54
    %v76 = vmul.f32 %v70, %v54
    %v77 = vmul.f32 %v72, %v54
    %v78 = vmul.f32 %v74, %v54
    %v79 = vadd.f32 %v75, 1e-06
    %v80 = vadd.f32 %v76, 1e-06
    %v81 = vadd.f32 %v77, 1e-06
    %v82 = vadd.f32 %v78, 1e-06
    %v83 = vrsqrt.pop %v79
    %v84 = vmul.f32 %v83, %v79
    %v85 = vmul.f32 %v84, %v83
    %v86 = vmul.f32 0.5, %v85
    %v87 = vsub.f32 1.5, %v86
    %v88 = vmul.f32 %v83, %v87
    %vm89 = vweird.f32 %v79
    %vm90 = vweird.f32 %v83
    %vm91 = vmor %vm89, %vm90
    %v92 = vsel %vm91, %v83, %v88
    %v93 = vrsqrt.pop %v80
    %v94 = vmul.f32 %v93, %v80
    %v95 = vmul.f32 %v94, %v93
    %v96 = vmul.f32 0.5, %v95
    %v97 = vsub.f32 1.5, %v96
    %v98 = vmul.f32 %v93, %v97
    %vm99 = vweird.f32 %v80
    %vm100 = vweird.f32 %v93
    %vm101 = vmor %vm99, %vm100
    %v102 = vsel %vm101, %v93, %v98
    %v103 = vrsqrt.pop %v81
    %v104 = vmul.f32 %v103, %v81
    %v105 = vmul.f32 %v104, %v103
    %v106 = vmul.f32 0.5, %v105
    %v107 = vsub.f32 1.5, %v106
    %v108 = vmul.f32 %v103, %v107
    %vm109 = vweird.f32 %v81
    %vm110 = vweird.f32 %v103
    %vm111 = vmor %vm109, %vm110
    %v112 = vsel %vm111, %v103, %v108
    %v113 = vrsqrt.pop %v82
    %v114 = vmul.f32 %v113, %v82
    %v115 = vmul.f32 %v114, %v113
    %v116 = vmul.f32 0.5, %v115
    %v117 = vsub.f32 1.5, %v116
    %v118 = vmul.f32 %v113, %v117
    %vm119 = vweird.f32 %v82
    %vm120 = vweird.f32 %v113
    %vm121 = vmor %vm119, %vm120
    %v122 = vsel %vm121, %v113, %v118
    %v123 = vmul.f32 %v59, %v92
    %v124 = vmul.f32 %v60, %v102
    %v125 = vmul.f32 %v61, %v112
    %v126 = vmul.f32 %v62, %v122
    %v127 = vld [vmem:[%s1] sm:$0x1]
    %v129 = vperm.slane %v127, 0
    %v131 = vmul.f32 %v123, %v129
    %v132 = vmul.f32 %v124, %v129
    %v133 = vmul.f32 %v125, %v129
    %v134 = vmul.f32 %v126, %v129
    %v135 = vld [vmem:[%s2] sm:$0x1]
    %v137 = vperm.slane %v135, 0
    %v139 = vadd.f32 %v131, %v137
    %v140 = vadd.f32 %v132, %v137
    %v141 = vadd.f32 %v133, %v137
    %v142 = vadd.f32 %v134, %v137
    %v143 = vld [vmem:[#allocation2] sm:$0xff]
    %v144 = vld [vmem:[#allocation2 + $0x8] sm:$0xff]
    %v145 = vld [vmem:[#allocation2 + $0x10] sm:$0xff]
    %v146 = vld [vmem:[#allocation2 + $0x18] sm:$0xff]
    %v147 = vld [vmem:[#allocation2 + $0x20] sm:$0xff]
    %v148 = vld [vmem:[#allocation2 + $0x28] sm:$0xff]
    %v149 = vld [vmem:[#allocation2 + $0x30] sm:$0xff]
    %v150 = vld [vmem:[#allocation2 + $0x38] sm:$0xff]
    %v151 = vld [vmem:[#allocation2 + $0x40] sm:$0xff]
    %v152 = vld [vmem:[#allocation2 + $0x48] sm:$0xff]
    %v153 = vld [vmem:[#allocation2 + $0x50] sm:$0xff]
    %v154 = vld [vmem:[#allocation2 + $0x58] sm:$0xff]
    %v155 = vld [vmem:[#allocation2 + $0x60] sm:$0xff]
    %v156 = vld [vmem:[#allocation2 + $0x68] sm:$0xff]
    %v157 = vld [vmem:[#allocation2 + $0x70] sm:$0xff]
    %v158 = vld [vmem:[#allocation2 + $0x78] sm:$0xff]
    %v159 = vld [vmem:[#allocation2 + $0x80] sm:$0xff]
    %v160 = vld [vmem:[#allocation2 + $0x88] sm:$0xff]
    %v161 = vld [vmem:[#allocation2 + $0x90] sm:$0xff]
    %v162 = vld [vmem:[#allocation2 + $0x98] sm:$0xff]
    %v163 = vld [vmem:[#allocation2 + $0xa0] sm:$0xff]
    %v164 = vld [vmem:[#allocation2 + $0xa8] sm:$0xff]
    %v165 = vld [vmem:[#allocation2 + $0xb0] sm:$0xff]
    %v166 = vld [vmem:[#allocation2 + $0xb8] sm:$0xff]
    %v167 = vld [vmem:[#allocation2 + $0xc0] sm:$0xff]
    %v168 = vld [vmem:[#allocation2 + $0xc8] sm:$0xff]
    %v169 = vld [vmem:[#allocation2 + $0xd0] sm:$0xff]
    %v170 = vld [vmem:[#allocation2 + $0xd8] sm:$0xff]
    %v171 = vld [vmem:[#allocation2 + $0xe0] sm:$0xff]
    %v172 = vld [vmem:[#allocation2 + $0xe8] sm:$0xff]
    %v173 = vld [vmem:[#allocation2 + $0xf0] sm:$0xff]
    %v174 = vld [vmem:[#allocation2 + $0xf8] sm:$0xff]
    %v175 = vld [vmem:[#allocation2 + $0x100] sm:$0xff]
    %v176 = vld [vmem:[#allocation2 + $0x108] sm:$0xff]
    %v177 = vld [vmem:[#allocation2 + $0x110] sm:$0xff]
    %v178 = vld [vmem:[#allocation2 + $0x118] sm:$0xff]
    %v179 = vld [vmem:[#allocation2 + $0x120] sm:$0xff]
    %v180 = vld [vmem:[#allocation2 + $0x128] sm:$0xff]
    %v181 = vld [vmem:[#allocation2 + $0x130] sm:$0xff]
    %v182 = vld [vmem:[#allocation2 + $0x138] sm:$0xff]
    %v183 = vld [vmem:[#allocation2 + $0x140] sm:$0xff]
    %v184 = vld [vmem:[#allocation2 + $0x148] sm:$0xff]
    %v185 = vld [vmem:[#allocation2 + $0x150] sm:$0xff]
    %v186 = vld [vmem:[#allocation2 + $0x158] sm:$0xff]
    %v187 = vld [vmem:[#allocation2 + $0x160] sm:$0xff]
    %v188 = vld [vmem:[#allocation2 + $0x168] sm:$0xff]
    %v189 = vld [vmem:[#allocation2 + $0x170] sm:$0xff]
    %v190 = vld [vmem:[#allocation2 + $0x178] sm:$0xff]
    %v191 = vld [vmem:[%s4] sm:$0x7]
    %v193 = vperm.slane %v191, 0
    %v194 = vperm.slane %v191, 1
    %v195 = vperm.slane %v191, 2
    %199 = vmatpush.msra.mxu0 %v188
    %200 = vmatpush.msra.mxu0 %v185
    %201 = vmatpush.msra.mxu0 %v182
    %202 = vmatpush.msra.mxu0 %v179
    %203 = vmatpush.msra.mxu0 %v176
    %204 = vmatpush.msra.mxu0 %v173
    %205 = vmatpush.msra.mxu0 %v170
    %206 = vmatpush.msra.mxu0 %v167
    %207 = vmatpush.msra.mxu0 %v164
    %208 = vmatpush.msra.mxu0 %v161
    %209 = vmatpush.msra.mxu0 %v158
    %210 = vmatpush.msra.mxu0 %v155
    %211 = vmatpush.msra.mxu0 %v152
    %212 = vmatpush.msra.mxu0 %v149
    %213 = vmatpush.msra.mxu0 %v146
    %214 = vmatpush.msra.mxu0 %v143
    %215 = vmatmul.f32.gmra.mxu0 %v139
    %v216 = vpop.f32.mrf.mxu0
    %v217 = vadd.f32 %v193, %v216
    %218 = vmatmul.f32.gmra.mxu0 %v140
    %v219 = vpop.f32.mrf.mxu0
    %v220 = vadd.f32 %v193, %v219
    %221 = vmatmul.f32.gmra.mxu0 %v141
    %v222 = vpop.f32.mrf.mxu0
    %v223 = vadd.f32 %v193, %v222
    %224 = vmatmul.f32.gmra.mxu0 %v142
    %v225 = vpop.f32.mrf.mxu0
    %v226 = vadd.f32 %v193, %v225
    %227 = vdwg.mxu0
    %228 = vmatpush.msra.mxu0 %v189
    %229 = vmatpush.msra.mxu0 %v186
    %230 = vmatpush.msra.mxu0 %v183
    %231 = vmatpush.msra.mxu0 %v180
    %232 = vmatpush.msra.mxu0 %v177
    %233 = vmatpush.msra.mxu0 %v174
    %234 = vmatpush.msra.mxu0 %v171
    %235 = vmatpush.msra.mxu0 %v168
    %236 = vmatpush.msra.mxu0 %v165
    %237 = vmatpush.msra.mxu0 %v162
    %238 = vmatpush.msra.mxu0 %v159
    %239 = vmatpush.msra.mxu0 %v156
    %240 = vmatpush.msra.mxu0 %v153
    %241 = vmatpush.msra.mxu0 %v150
    %242 = vmatpush.msra.mxu0 %v147
    %243 = vmatpush.msra.mxu0 %v144
    %244 = vmatmul.f32.gmra.mxu0 %v139
    %v245 = vpop.f32.mrf.mxu0
    %v246 = vadd.f32 %v194, %v245
    %247 = vmatmul.f32.gmra.mxu0 %v140
    %v248 = vpop.f32.mrf.mxu0
    %v249 = vadd.f32 %v194, %v248
    %250 = vmatmul.f32.gmra.mxu0 %v141
    %v251 = vpop.f32.mrf.mxu0
    %v252 = vadd.f32 %v194, %v251
    %253 = vmatmul.f32.gmra.mxu0 %v142
    %v254 = vpop.f32.mrf.mxu0
    %v255 = vadd.f32 %v194, %v254
    %256 = vdwg.mxu0
    %257 = vmatpush.msra.mxu0 %v190
    %258 = vmatpush.msra.mxu0 %v187
    %259 = vmatpush.msra.mxu0 %v184
    %260 = vmatpush.msra.mxu0 %v181
    %261 = vmatpush.msra.mxu0 %v178
    %262 = vmatpush.msra.mxu0 %v175
    %263 = vmatpush.msra.mxu0 %v172
    %264 = vmatpush.msra.mxu0 %v169
    %265 = vmatpush.msra.mxu0 %v166
    %266 = vmatpush.msra.mxu0 %v163
    %267 = vmatpush.msra.mxu0 %v160
    %268 = vmatpush.msra.mxu0 %v157
    %269 = vmatpush.msra.mxu0 %v154
    %270 = vmatpush.msra.mxu0 %v151
    %271 = vmatpush.msra.mxu0 %v148
    %272 = vmatpush.msra.mxu0 %v145
    %273 = vmatmul.f32.gmra.mxu0 %v139
    %v274 = vpop.f32.mrf.mxu0
    %v275 = vadd.f32 %v195, %v274
    %276 = vmatmul.f32.gmra.mxu0 %v140
    %v277 = vpop.f32.mrf.mxu0
    %v278 = vadd.f32 %v195, %v277
    %279 = vmatmul.f32.gmra.mxu0 %v141
    %v280 = vpop.f32.mrf.mxu0
    %v281 = vadd.f32 %v195, %v280
    %282 = vmatmul.f32.gmra.mxu0 %v142
    %v283 = vpop.f32.mrf.mxu0
    %v284 = vadd.f32 %v195, %v283
    %285 = vdwg.mxu0
    %286 = vst [vmem:[%s5] sm:$0xff] %v217
    %287 = vst [vmem:[%s5 + $0x8] sm:$0xff] %v246
    %288 = vst [vmem:[%s5 + $0x10] sm:$0xff] %v275
    %289 = vst [vmem:[%s5 + $0x18] sm:$0xff] %v220
    %290 = vst [vmem:[%s5 + $0x20] sm:$0xff] %v249
    %291 = vst [vmem:[%s5 + $0x28] sm:$0xff] %v278
    %292 = vst [vmem:[%s5 + $0x30] sm:$0xff] %v223
    %293 = vst [vmem:[%s5 + $0x38] sm:$0xff] %v252
    %294 = vst [vmem:[%s5 + $0x40] sm:$0xff] %v281
    %295 = vst [vmem:[%s5 + $0x48] sm:$0xff] %v226
    %296 = vst [vmem:[%s5 + $0x50] sm:$0xff] %v255
    %297 = vst [vmem:[%s5 + $0x58] sm:$0xff] %v284
    // Predicated region
    $region26: #{intra_transformer_forward.7} parent=1 // pred_check
      _
    $region27: #{intra_transformer_forward.7} parent=1 // pred_check_branch
      %299 = sbr.rel (0) target = $region29
    $region28: #{intra_transformer_forward.7} parent=1 // pred_region
      _
    $region29: #{intra_transformer_forward.7} parent=1 // pred_fallthru
      _
    // Predicated region
    $region30: #{intra_transformer_forward.7} parent=1 // pred_check
      _
    $region31: #{intra_transformer_forward.7} parent=1 // pred_check_branch
      %301 = sbr.rel (0) target = $region33
    $region32: #{intra_transformer_forward.7} parent=1 // pred_region
      _
    $region33: #{intra_transformer_forward.7} parent=1 // pred_fallthru
      _
    %302 = vsyncpa [#allocation3], 1

// kernel: intra_transformer_forward.8
$region0: #{intra_transformer_forward.8}
  #allocation0 [shape = 'u32[]', space=smem, size = 0x4, offset = 0x4, fixed_abs, tag = 'smem constant byte address 0x4 - core index']
  #allocation1 [shape = 'u32[72,128]{1,0:T(1,128)}', space=vmem, size = 0x9000, scoped, tag = 'internal scratch']
  %s0 = inlined_call_operand.vmem [shape: f32[2,16,384], index: 0, kind: input, shape index: {}]
  %s1 = inlined_call_operand.vmem [shape: f32[2,16,128], index: 1, kind: input, shape index: {}]
  %s2 = inlined_call_operand.hbm [shape: f32[128,128], index: 2, kind: input, shape index: {}]
  %s3 = inlined_call_operand.vmem [shape: f32[1,128], index: 3, kind: input, shape index: {}]
  %s4 = inlined_call_operand.vmem [shape: f32[2,16,128], index: 4, kind: output, shape index: {}]
  %s5 = sld [smem:[#allocation0]]
  $region53: #{intra_transformer_forward.8} parent=0
    _
  %s7 = ssub.s32 1, %s5
  %s8 = scalar_select 0, %s7, %s5
  $region1: #{intra_transformer_forward.8} parent=0
    #allocation2 [shape = 'u8[65536]{0}', space=vmem, size = 0x10000, scoped, tag = 'input window, operand 2, single buffered']
    #allocation3 [shape = 's32[2]{0}', space=sflag, size = 0x8, scoped, tag = 'scoped memory for intra_transformer_forward.8']
    %9 = vsyncpa [#allocation3], 0
    loop: start=0, step=1, limit=4
    $region2: #{intra_transformer_forward.8} parent=1 // loop_pre_header
      _
    $region3: #{intra_transformer_forward.8} parent=1 // loop_header
      %s11 = sphi 0, %s15
      %p12 = scmp.ge.s32.totalorder %s11, 4
      %s18 = sphi 0, %s30
      %s19 = sphi 0, %s26
      %s20 = sphi 0, %s18
      %s21 = sphi 0, %s19
      %s22 = sphi 0, %s20
      %s23 = sphi 0, %s21
      %s33 = sphi 0, %s35
      %s36 = sphi 0, %s33
      %s37 = sphi 0, %s36
      %s53 = sphi 0, %s37
      %s61 = sphi 0, %s63
      %s64 = sphi 0, %s61
      %s65 = sphi 0, %s64
      %s81 = sphi 0, %s65
      %s85 = sphi 0, %s85
      %s87 = sphi 0, %s85
      %s88 = sphi 0, %s87
      %s102 = sphi 0, %s88
      %s106 = sphi 0, %s106
      %s108 = sphi 0, %s106
      %s109 = sphi 0, %s108
      %s123 = sphi 0, %s109
      %s131 = sphi 0, %s133
      %s134 = sphi 0, %s131
      %s135 = sphi 0, %s134
      %s151 = sphi 0, %s135
    $region4: #{intra_transformer_forward.8} parent=1 // loop_header_branch
      %14 = sbr.rel (%p12) target = $region8
    $region5: #{intra_transformer_forward.8} parent=1 // loop_body
      %s16 = ssub.s32 %s11, 1
      %s17 = ssub.s32 %s11, 2
      %s24 = sadd.s32 1, %s19
      %p25 = scmp.ge.s32.totalorder %s24, 1
      %s26 = scalar_select %p25, 0, %s24
      %s27 = sadd.s32 1, %s18
      %s28 = scalar_select %p25, %s27, %s18
      %p29 = scmp.ge.s32.totalorder %s28, 2
      %s30 = scalar_select %p29, 0, %s28
      %s31 = ssub.s32 %s18, %s30
      %p32 = scmp.eq.s32.totalorder %s31, 0
      %s34 = sadd.s32 %s33, 1
      %s35 = scalar_select %p32, %s33, %s34
      %p38 = pneg %p32
      %p39 = scmp.eq.s32.totalorder %s11, 1
      %p40 = por %p38, %p39
      %p41 = scmp.ne.s32.totalorder %s33, %s36
      %p42 = scmp.eq.s32.totalorder %s11, 0
      %p43 = por %p41, %p42
      %p44 = scmp.ne.s32.totalorder %s33, %s36
      %p45 = scmp.eq.s32.totalorder %s16, 1
      %p46 = por %p44, %p45
      %p47 = scmp.ne.s32.totalorder %s36, %s37
      %p48 = scmp.eq.s32.totalorder %s16, 0
      %p49 = por %p47, %p48
      %p50 = scmp.ne.s32.totalorder %s36, %s37
      %p51 = scmp.eq.s32.totalorder %s17, 1
      %p52 = por %p50, %p51
      %p54 = scmp.ne.s32.totalorder %s37, %s53
      %p55 = scmp.eq.s32.totalorder %s17, 0
      %p56 = por %p54, %p55
      %s57 = ssub.s32 %s18, %s30
      %s58 = ssub.s32 %s19, %s26
      %s59 = sor.u32 %s57, %s58
      %p60 = scmp.eq.s32.totalorder %s59, 0
      %s62 = sadd.s32 %s61, 1
      %s63 = scalar_select %p60, %s61, %s62
      %p66 = pneg %p60
      %p67 = scmp.eq.s32.totalorder %s11, 1
      %p68 = por %p66, %p67
      %p69 = scmp.ne.s32.totalorder %s61, %s64
      %p70 = scmp.eq.s32.totalorder %s11, 0
      %p71 = por %p69, %p70
      %p72 = scmp.ne.s32.totalorder %s61, %s64
      %p73 = scmp.eq.s32.totalorder %s16, 1
      %p74 = por %p72, %p73
      %p75 = scmp.ne.s32.totalorder %s64, %s65
      %p76 = scmp.eq.s32.totalorder %s16, 0
      %p77 = por %p75, %p76
      %p78 = scmp.ne.s32.totalorder %s64, %s65
      %p79 = scmp.eq.s32.totalorder %s17, 1
      %p80 = por %p78, %p79
      %p82 = scmp.ne.s32.totalorder %s65, %s81
      %p83 = scmp.eq.s32.totalorder %s17, 0
      %p84 = por %p82, %p83
      %s86 = sadd.s32 %s85, 1
      %p89 = scmp.eq.s32.totalorder %s11, 1
      %p90 = scmp.ne.s32.totalorder %s85, %s87
      %p91 = scmp.eq.s32.totalorder %s11, 0
      %p92 = por %p90, %p91
      %p93 = scmp.ne.s32.totalorder %s85, %s87
      %p94 = scmp.eq.s32.totalorder %s16, 1
      %p95 = por %p93, %p94
      %p96 = scmp.ne.s32.totalorder %s87, %s88
      %p97 = scmp.eq.s32.totalorder %s16, 0
      %p98 = por %p96, %p97
      %p99 = scmp.ne.s32.totalorder %s87, %s88
      %p100 = scmp.eq.s32.totalorder %s17, 1
      %p101 = por %p99, %p100
      %p103 = scmp.ne.s32.totalorder %s88, %s102
      %p104 = scmp.eq.s32.totalorder %s17, 0
      %p105 = por %p103, %p104
      %s107 = sadd.s32 %s106, 1
      %p110 = scmp.eq.s32.totalorder %s11, 1
      %p111 = scmp.ne.s32.totalorder %s106, %s108
      %p112 = scmp.eq.s32.totalorder %s11, 0
      %p113 = por %p111, %p112
      %p114 = scmp.ne.s32.totalorder %s106, %s108
      %p115 = scmp.eq.s32.totalorder %s16, 1
      %p116 = por %p114, %p115
      %p117 = scmp.ne.s32.totalorder %s108, %s109
      %p118 = scmp.eq.s32.totalorder %s16, 0
      %p119 = por %p117, %p118
      %p120 = scmp.ne.s32.totalorder %s108, %s109
      %p121 = scmp.eq.s32.totalorder %s17, 1
      %p122 = por %p120, %p121
      %p124 = scmp.ne.s32.totalorder %s109, %s123
      %p125 = scmp.eq.s32.totalorder %s17, 0
      %p126 = por %p124, %p125
      %s127 = ssub.s32 %s18, %s30
      %s128 = ssub.s32 %s19, %s26
      %s129 = sor.u32 %s127, %s128
      %p130 = scmp.eq.s32.totalorder %s129, 0
      %s132 = sadd.s32 %s131, 1
      %s133 = scalar_select %p130, %s131, %s132
      %p136 = pneg %p130
      %p137 = scmp.eq.s32.totalorder %s11, 1
      %p138 = por %p136, %p137
      %p139 = scmp.ne.s32.totalorder %s131, %s134
      %p140 = scmp.eq.s32.totalorder %s11, 0
      %p141 = por %p139, %p140
      %p142 = scmp.ne.s32.totalorder %s131, %s134
      %p143 = scmp.eq.s32.totalorder %s16, 1
      %p144 = por %p142, %p143
      %p145 = scmp.ne.s32.totalorder %s134, %s135
      %p146 = scmp.eq.s32.totalorder %s16, 0
      %p147 = por %p145, %p146
      %p148 = scmp.ne.s32.totalorder %s134, %s135
      %p149 = scmp.eq.s32.totalorder %s17, 1
      %p150 = por %p148, %p149
      %p152 = scmp.ne.s32.totalorder %s135, %s151
      %p153 = scmp.eq.s32.totalorder %s17, 0
      %p154 = por %p152, %p153
      %p155 = scmp.le.s32.totalorder 1, %s11
      %p156 = scmp.lt.s32.totalorder %s11, 3
      %p157 = pnand %p155, %p156
      %p158 = pneg %p157
      // Predicated region
      $region9: #{intra_transformer_forward.8} parent=5 // pred_check
        _
      $region10: #{intra_transformer_forward.8} parent=5 // pred_check_branch
        %160 = sbr.rel (%p157) target = $region12
      $region11: #{intra_transformer_forward.8} parent=5 // pred_region
        %s161 = ssub.s32 %s11, 1
        // Predicated region
        $region13: #{intra_transformer_forward.8} parent=11 // pred_check
          %p162 = pneg %p98
        $region14: #{intra_transformer_forward.8} parent=11 // pred_check_branch
          %164 = sbr.rel (%p162) target = $region16
        $region15: #{intra_transformer_forward.8} parent=11 // pred_region
          %166 = vsyncadd [#allocation3], 0
          %s167 = sshll.u32 %s2, 4
          %s168 = int_to_ptr.hbm [resolvable:$true] %s167
          %s169 = sshll.u32 [#allocation2], 4
          %s170 = int_to_ptr.vmem [resolvable:$true] %s169
          %175 = dma.hbm_to_vmem [thread:$0]  %s168, 2048, %s170, [#allocation3], 128, 128, 8
        $region16: #{intra_transformer_forward.8} parent=11 // pred_fallthru
          _
        // Predicated region
        $region17: #{intra_transformer_forward.8} parent=11 // pred_check
          %p176 = pneg %p119
        $region18: #{intra_transformer_forward.8} parent=11 // pred_check_branch
          %178 = sbr.rel (%p176) target = $region20
        $region19: #{intra_transformer_forward.8} parent=11 // pred_region
          _
        $region20: #{intra_transformer_forward.8} parent=11 // pred_fallthru
          _
      $region12: #{intra_transformer_forward.8} parent=5 // pred_fallthru
        _
      %p179 = scmp.lt.s32.totalorder %s11, 2
      // Predicated region
      $region21: #{intra_transformer_forward.8} parent=5 // pred_check
        %p180 = pneg %p179
      $region22: #{intra_transformer_forward.8} parent=5 // pred_check_branch
        %182 = sbr.rel (%p180) target = $region24
      $region23: #{intra_transformer_forward.8} parent=5 // pred_region
        // Predicated region
        $region25: #{intra_transformer_forward.8} parent=23 // pred_check
          %p183 = pneg %p43
        $region26: #{intra_transformer_forward.8} parent=23 // pred_check_branch
          %185 = sbr.rel (%p183) target = $region28
        $region27: #{intra_transformer_forward.8} parent=23 // pred_region
          %p186 = scmp.lt.s32.totalorder %s18, 1
          %s187 = scalar_select %p186, %s18, 1
          %s188 = smul.addr %s187, 6
          %s189 = smul.addr %s188, 8
          %s190 = scalar_lea.vmem %s0, %s189
        $region28: #{intra_transformer_forward.8} parent=23 // pred_fallthru
          _
        // Predicated region
        $region29: #{intra_transformer_forward.8} parent=23 // pred_check
          %p191 = pneg %p71
        $region30: #{intra_transformer_forward.8} parent=23 // pred_check_branch
          %193 = sbr.rel (%p191) target = $region32
        $region31: #{intra_transformer_forward.8} parent=23 // pred_region
          %s194 = smul.u32 2, %s19
          %p195 = scmp.lt.s32.totalorder %s18, 1
          %s196 = scalar_select %p195, %s18, 1
          %p197 = scmp.lt.s32.totalorder %s194, 1
          %s198 = scalar_select %p197, %s194, 1
          %s199 = smul.addr %s196, 2
          %s200 = sadd.s32 %s198, %s199
          %s201 = smul.addr %s200, 8
          %s202 = scalar_lea.vmem %s1, %s201
          %s203 = smul.u32 2, %s19
        $region32: #{intra_transformer_forward.8} parent=23 // pred_fallthru
          _
      $region24: #{intra_transformer_forward.8} parent=5 // pred_fallthru
        _
      %p204 = scmp.le.s32.totalorder 1, %s11
      %p205 = scmp.lt.s32.totalorder %s11, 3
      %p206 = pnand %p204, %p205
      %p207 = pneg %p206
      // Predicated region
      $region33: #{intra_transformer_forward.8} parent=5 // pred_check
        _
      $region34: #{intra_transformer_forward.8} parent=5 // pred_check_branch
        %209 = sbr.rel (%p206) target = $region36
      $region35: #{intra_transformer_forward.8} parent=5 // pred_region
        %s210 = ssub.s32 %s11, 1
        // Predicated region
        $region37: #{intra_transformer_forward.8} parent=35 // pred_check
          %p211 = pneg %p98
        $region38: #{intra_transformer_forward.8} parent=35 // pred_check_branch
          %213 = sbr.rel (%p211) target = $region40
        $region39: #{intra_transformer_forward.8} parent=35 // pred_region
          %215 = dma.done [#allocation3], 2048
        $region40: #{intra_transformer_forward.8} parent=35 // pred_fallthru
          _
        %p216 = scmp.lt.s32.totalorder %s20, 1
        %s217 = scalar_select %p216, %s20, 1
        %s218 = smul.addr %s217, 6
        %s219 = smul.addr %s218, 8
        %s220 = scalar_lea.vmem %s0, %s219
        %p221 = pneg %p49
        %p222 = pneg %p46
        %s223 = smul.u32 2, %s21
        %p224 = scmp.lt.s32.totalorder %s20, 1
        %s225 = scalar_select %p224, %s20, 1
        %p226 = scmp.lt.s32.totalorder %s223, 1
        %s227 = scalar_select %p226, %s223, 1
        %s228 = smul.addr %s225, 2
        %s229 = sadd.s32 %s227, %s228
        %s230 = smul.addr %s229, 8
        %s231 = scalar_lea.vmem %s1, %s230
        %p232 = pneg %p77
        %p233 = pneg %p74
        %p234 = pneg %p98
        %p235 = pneg %p95
        %p236 = pneg %p119
        %p237 = pneg %p116
        %p238 = pneg %p147
        %p239 = pneg %p144
        %s240 = smul.u32 2, %s21
        %p241 = scmp.lt.s32.totalorder %s20, 1
        %s242 = scalar_select %p241, %s20, 1
        %p243 = scmp.lt.s32.totalorder %s240, 1
        %s244 = scalar_select %p243, %s240, 1
        %s245 = smul.addr %s242, 2
        %s246 = sadd.s32 %s244, %s245
        %s247 = smul.addr %s246, 8
        %s248 = scalar_lea.vmem %s4, %s247
        %p249 = scmp.lt.s32.totalorder %s20, 1
        %s250 = scalar_select %p249, %s20, 1
        %s251 = smul.addr %s250, 6
        %s252 = smul.addr %s251, 8
        %s253 = scalar_lea.vmem %s0, %s252
        %s254 = smul.u32 2, %s21
        %p255 = scmp.lt.s32.totalorder %s20, 1
        %s256 = scalar_select %p255, %s20, 1
        %p257 = scmp.lt.s32.totalorder %s254, 1
        %s258 = scalar_select %p257, %s254, 1
        %s259 = smul.addr %s256, 2
        %s260 = sadd.s32 %s258, %s259
        %s261 = smul.addr %s260, 8
        %s262 = scalar_lea.vmem %s1, %s261
        %s263 = smul.u32 2, %s21
        %s264 = smul.u32 2, %s21
        %p265 = scmp.lt.s32.totalorder %s20, 1
        %s266 = scalar_select %p265, %s20, 1
        %p267 = scmp.lt.s32.totalorder %s264, 1
        %s268 = scalar_select %p267, %s264, 1
        %s269 = smul.addr %s266, 2
        %s270 = sadd.s32 %s268, %s269
        %s271 = smul.addr %s270, 8
        %s272 = scalar_lea.vmem %s4, %s271
        %s273 = smul.u32 2, %s21
        %s274 = smul.u32 %s21, 16
        %s275 = sshra.s32 %s274, 3
        %s276 = sand.u32 %s274, 7
        %s277 = smul.u32 %s275, 3
        %s278 = smul.addr %s277, 8
        %s279 = scalar_lea.vmem %s253, %s278
        %v280 = vld [vmem:[%s279] sm:$0xff]
        %v281 = vld [vmem:[%s279 + $0x18] sm:$0xff]
        %v282 = vld [vmem:[%s253 + $0x8] sm:$0xff]
        %v283 = vld [vmem:[%s253 + $0x20] sm:$0xff]
        %v284 = vld [vmem:[%s253 + $0x10] sm:$0xff]
        %v285 = vld [vmem:[%s253 + $0x28] sm:$0xff]
        %286 = vmatpush.xpose.msra.mxu0 0.0
        %287 = vmatpush.xpose.msra.mxu0 0.0
        %288 = vmatpush.xpose.msra.mxu0 0.0
        %289 = vmatpush.xpose.msra.mxu0 0.0
        %290 = vmatpush.xpose.msra.mxu0 0.0
        %291 = vmatpush.xpose.msra.mxu0 0.0
        %292 = vmatpush.xpose.msra.mxu0 0.0
        %293 = vmatpush.xpose.msra.mxu0 0.0
        %294 = vmatpush.xpose.msra.mxu0 0.0
        %295 = vmatpush.xpose.msra.mxu0 0.0
        %296 = vmatpush.xpose.msra.mxu0 0.0
        %297 = vmatpush.xpose.msra.mxu0 0.0
        %298 = vmatpush.xpose.msra.mxu0 0.0
        %299 = vmatpush.xpose.msra.mxu0 0.0
        %300 = vmatpush.xpose.msra.mxu0 %v283
        %301 = vmatpush.xpose.msra.mxu0 %v282
        %302 = vmatmul.f32.gmra.mxu0 %v280
        %v303 = vpop.f32.mrf.mxu0
        %v304 = vadd.f32 0.0, %v303
        %305 = vmatmul.f32.gmra.mxu0 %v281
        %v306 = vpop.f32.mrf.mxu0
        %v307 = vadd.f32 0.0, %v306
        %308 = vdwg.mxu0
        %vm309 = vcmask 130048
        %v310 = vsel %vm309, %v304, -inf
        %311 = vmax.xlane.f32.xlu0 %v310
        %v312 = vpop.xlane.xlu0 %311
        %v313 = vsel %vm309, %v307, -inf
        %314 = vmax.xlane.f32.xlu0 %v313
        %v315 = vpop.xlane.xlu0 %314
        %v316 = vsub.f32 %v304, %v312
        %v317 = vsub.f32 %v307, %v315
        %v318 = vmul.f32 %v316, 1.442695
        %v319 = vpow.pop %v318
        %v320 = vmul.f32 %v317, 1.442695
        %v321 = vpow.pop %v320
        %v322 = vsel %vm309, %v319, 0.0
        %323 = vadd.xlane.f32.xlu0 %v322
        %v324 = vpop.xlane.xlu0 %323
        %v325 = vsel %vm309, %v321, 0.0
        %326 = vadd.xlane.f32.xlu0 %v325
        %v327 = vpop.xlane.xlu0 %326
        %v328 = vrcp.pop %v324
        %v329 = vrcp.pop %v327
        %v330 = vmul.f32 %v319, %v328
        %v331 = vmul.f32 %v321, %v329
        %v333 = vsel %vm309, %v330, 0
        %v336 = vsel %vm309, %v331, 0
        %338 = vmatpush.msra.mxu0 0.0
        %339 = vmatpush.msra.mxu0 0.0
        %340 = vmatpush.msra.mxu0 0.0
        %341 = vmatpush.msra.mxu0 0.0
        %342 = vmatpush.msra.mxu0 0.0
        %343 = vmatpush.msra.mxu0 0.0
        %344 = vmatpush.msra.mxu0 0.0
        %345 = vmatpush.msra.mxu0 0.0
        %346 = vmatpush.msra.mxu0 0.0
        %347 = vmatpush.msra.mxu0 0.0
        %348 = vmatpush.msra.mxu0 0.0
        %349 = vmatpush.msra.mxu0 0.0
        %350 = vmatpush.msra.mxu0 0.0
        %351 = vmatpush.msra.mxu0 0.0
        %352 = vmatpush.msra.mxu0 %v285
        %353 = vmatpush.msra.mxu0 %v284
        %354 = vmatmul.f32.gmra.mxu0 %v333
        %v355 = vpop.f32.mrf.mxu0
        %v356 = vadd.f32 0.0, %v355
        %357 = vmatmul.f32.gmra.mxu0 %v336
        %v358 = vpop.f32.mrf.mxu0
        %v359 = vadd.f32 0.0, %v358
        %360 = vdwg.mxu0
        %v361 = vld [vmem:[#allocation2] sm:$0xff]
        %v362 = vld [vmem:[#allocation2 + $0x8] sm:$0xff]
        %v363 = vld [vmem:[#allocation2 + $0x10] sm:$0xff]
        %v364 = vld [vmem:[#allocation2 + $0x18] sm:$0xff]
        %v365 = vld [vmem:[#allocation2 + $0x20] sm:$0xff]
        %v366 = vld [vmem:[#allocation2 + $0x28] sm:$0xff]
        %v367 = vld [vmem:[#allocation2 + $0x30] sm:$0xff]
        %v368 = vld [vmem:[#allocation2 + $0x38] sm:$0xff]
        %v369 = vld [vmem:[#allocation2 + $0x40] sm:$0xff]
        %v370 = vld [vmem:[#allocation2 + $0x48] sm:$0xff]
        %v371 = vld [vmem:[#allocation2 + $0x50] sm:$0xff]
        %v372 = vld [vmem:[#allocation2 + $0x58] sm:$0xff]
        %v373 = vld [vmem:[#allocation2 + $0x60] sm:$0xff]
        %v374 = vld [vmem:[#allocation2 + $0x68] sm:$0xff]
        %v375 = vld [vmem:[#allocation2 + $0x70] sm:$0xff]
        %v376 = vld [vmem:[#allocation2 + $0x78] sm:$0xff]
        %v377 = vld [vmem:[%s3] sm:$0x1]
        %v379 = vperm.slane %v377, 0
        %381 = vmatpush.msra.mxu0 %v376
        %382 = vmatpush.msra.mxu0 %v375
        %383 = vmatpush.msra.mxu0 %v374
        %384 = vmatpush.msra.mxu0 %v373
        %385 = vmatpush.msra.mxu0 %v372
        %386 = vmatpush.msra.mxu0 %v371
        %387 = vmatpush.msra.mxu0 %v370
        %388 = vmatpush.msra.mxu0 %v369
        %389 = vmatpush.msra.mxu0 %v368
        %390 = vmatpush.msra.mxu0 %v367
        %391 = vmatpush.msra.mxu0 %v366
        %392 = vmatpush.msra.mxu0 %v365
        %393 = vmatpush.msra.mxu0 %v364
        %394 = vmatpush.msra.mxu0 %v363
        %395 = vmatpush.msra.mxu0 %v362
        %396 = vmatpush.msra.mxu0 %v361
        %397 = vmatmul.f32.gmra.mxu0 %v356
        %v398 = vpop.f32.mrf.mxu0
        %v399 = vadd.f32 %v379, %v398
        %400 = vmatmul.f32.gmra.mxu0 %v359
        %v401 = vpop.f32.mrf.mxu0
        %v402 = vadd.f32 %v379, %v401
        %403 = vdwg.mxu0
        %v404 = vld [vmem:[%s262] sm:$0xff]
        %v405 = vld [vmem:[%s262 + $0x8] sm:$0xff]
        %v406 = vadd.f32 %v399, %v404
        %v407 = vadd.f32 %v402, %v405
        %408 = vst [vmem:[%s272] sm:$0xff] %v406
        %409 = vst [vmem:[%s272 + $0x8] sm:$0xff] %v407
        %s410 = smul.u32 2, %s21
        %p411 = scmp.lt.s32.totalorder %s20, 1
        %s412 = scalar_select %p411, %s20, 1
        %p413 = scmp.lt.s32.totalorder %s410, 1
        %s414 = scalar_select %p413, %s410, 1
        %s415 = smul.addr %s412, 2
        %s416 = sadd.s32 %s414, %s415
        %s417 = smul.addr %s416, 8
        %s418 = scalar_lea.vmem %s4, %s417
        // Predicated region
        $region41: #{intra_transformer_forward.8} parent=35 // pred_check
          %p419 = pneg %p144
        $region42: #{intra_transformer_forward.8} parent=35 // pred_check_branch
          %421 = sbr.rel (%p419) target = $region44
        $region43: #{intra_transformer_forward.8} parent=35 // pred_region
          %s422 = smul.u32 2, %s21
        $region44: #{intra_transformer_forward.8} parent=35 // pred_fallthru
          _
      $region36: #{intra_transformer_forward.8} parent=5 // pred_fallthru
        _
      %p423 = scmp.le.s32.totalorder 2, %s11
      // Predicated region
      $region45: #{intra_transformer_forward.8} parent=5 // pred_check
        %p424 = pneg %p423
      $region46: #{intra_transformer_forward.8} parent=5 // pred_check_branch
        %426 = sbr.rel (%p424) target = $region48
      $region47: #{intra_transformer_forward.8} parent=5 // pred_region
        %s427 = ssub.s32 %s11, 2
        // Predicated region
        $region49: #{intra_transformer_forward.8} parent=47 // pred_check
          %p428 = pneg %p150
        $region50: #{intra_transformer_forward.8} parent=47 // pred_check_branch
          %430 = sbr.rel (%p428) target = $region52
        $region51: #{intra_transformer_forward.8} parent=47 // pred_region
          %s431 = smul.u32 2, %s23
          %p432 = scmp.lt.s32.totalorder %s22, 1
          %s433 = scalar_select %p432, %s22, 1
          %p434 = scmp.lt.s32.totalorder %s431, 1
          %s435 = scalar_select %p434, %s431, 1
          %s436 = smul.addr %s433, 2
          %s437 = sadd.s32 %s435, %s436
          %s438 = smul.addr %s437, 8
          %s439 = scalar_lea.vmem %s4, %s438
        $region52: #{intra_transformer_forward.8} parent=47 // pred_fallthru
          _
      $region48: #{intra_transformer_forward.8} parent=5 // pred_fallthru
        _
    $region6: #{intra_transformer_forward.8} parent=1 // loop_footer
      %s15 = sadd.s32 1, %s11
    $region7: #{intra_transformer_forward.8} parent=1 // loop_footer_branch
      %10 = sbr.rel target = $region3
    $region8: #{intra_transformer_forward.8} parent=1 // loop_exit
      _
    %440 = vsyncpa [#allocation3], 1
    %s441 = scalar_lea.sflag [#allocation3], 1
    %442 = vsyncpa %s441, 1

// kernel: intra_transformer_forward.9
$region0: #{intra_transformer_forward.9}
  #allocation0 [shape = 'u32[]', space=smem, size = 0x4, offset = 0x4, fixed_abs, tag = 'smem constant byte address 0x4 - core index']
  #allocation1 [shape = 'u32[72,128]{1,0:T(1,128)}', space=vmem, size = 0x9000, scoped, tag = 'internal scratch']
  %s0 = inlined_call_operand.vmem [shape: f32[32,128], index: 0, kind: input, shape index: {}]
  %s1 = inlined_call_operand.vmem [shape: f32[1,128], index: 1, kind: input, shape index: {}]
  %s2 = inlined_call_operand.vmem [shape: f32[1,128], index: 2, kind: input, shape index: {}]
  %s3 = inlined_call_operand.hbm [shape: f32[128,512], index: 3, kind: input, shape index: {}]
  %s4 = inlined_call_operand.vmem [shape: f32[1,512], index: 4, kind: input, shape index: {}]
  %s5 = inlined_call_operand.hbm [shape: f32[512,128], index: 5, kind: input, shape index: {}]
  %s6 = inlined_call_operand.vmem [shape: f32[1,128], index: 6, kind: input, shape index: {}]
  %s7 = inlined_call_operand.vmem [shape: f32[32,128], index: 7, kind: output, shape index: {}]
  %s8 = sld [smem:[#allocation0]]
  $region46: #{intra_transformer_forward.9} parent=0
    _
  %s10 = ssub.s32 1, %s8
  %s11 = scalar_select 0, %s10, %s8
  $region1: #{intra_transformer_forward.9} parent=0
    #allocation2 [shape = 'u8[262144]{0}', space=vmem, size = 0x40000, scoped, tag = 'input window, operand 3, single buffered']
    #allocation3 [shape = 's32[1]{0}', space=sflag, size = 0x4, scoped, tag = 'scoped memory for intra_transformer_forward.9']
    #allocation4 [shape = 'u8[262144]{0}', space=vmem, size = 0x40000, scoped, tag = 'input window, operand 5, single buffered']
    #allocation5 [shape = 's32[1]{0}', space=sflag, size = 0x4, scoped, tag = 'scoped memory for intra_transformer_forward.9']
    %12 = vsyncpa [#allocation3], 0
    %13 = vsyncpa [#allocation5], 0
    // Predicated region
    $region2: #{intra_transformer_forward.9} parent=1 // pred_check
      _
    $region3: #{intra_transformer_forward.9} parent=1 // pred_check_branch
      %15 = sbr.rel (0) target = $region5
    $region4: #{intra_transformer_forward.9} parent=1 // pred_region
      _
    $region5: #{intra_transformer_forward.9} parent=1 // pred_fallthru
      _
    // Predicated region
    $region6: #{intra_transformer_forward.9} parent=1 // pred_check
      _
    $region7: #{intra_transformer_forward.9} parent=1 // pred_check_branch
      %17 = sbr.rel (0) target = $region9
    $region8: #{intra_transformer_forward.9} parent=1 // pred_region
      _
    $region9: #{intra_transformer_forward.9} parent=1 // pred_fallthru
      _
    // Predicated region
    $region10: #{intra_transformer_forward.9} parent=1 // pred_check
      _
    $region11: #{intra_transformer_forward.9} parent=1 // pred_check_branch
      %19 = sbr.rel (0) target = $region13
    $region12: #{intra_transformer_forward.9} parent=1 // pred_region
      _
    $region13: #{intra_transformer_forward.9} parent=1 // pred_fallthru
      _
    // Predicated region
    $region14: #{intra_transformer_forward.9} parent=1 // pred_check
      _
    $region15: #{intra_transformer_forward.9} parent=1 // pred_check_branch
      %21 = sbr.rel (0) target = $region17
    $region16: #{intra_transformer_forward.9} parent=1 // pred_region
      %23 = vsyncadd [#allocation3], 0
      %s24 = sshll.u32 %s3, 4
      %s25 = int_to_ptr.hbm [resolvable:$true] %s24
      %s26 = sshll.u32 [#allocation2], 4
      %s27 = int_to_ptr.vmem [resolvable:$true] %s26
      %32 = dma.hbm_to_vmem [thread:$0]  %s25, 8192, %s27, [#allocation3], 512, 512, 32
    $region17: #{intra_transformer_forward.9} parent=1 // pred_fallthru
      _
    // Predicated region
    $region18: #{intra_transformer_forward.9} parent=1 // pred_check
      _
    $region19: #{intra_transformer_forward.9} parent=1 // pred_check_branch
      %34 = sbr.rel (0) target = $region21
    $region20: #{intra_transformer_forward.9} parent=1 // pred_region
      _
    $region21: #{intra_transformer_forward.9} parent=1 // pred_fallthru
      _
    // Predicated region
    $region22: #{intra_transformer_forward.9} parent=1 // pred_check
      _
    $region23: #{intra_transformer_forward.9} parent=1 // pred_check_branch
      %36 = sbr.rel (0) target = $region25
    $region24: #{intra_transformer_forward.9} parent=1 // pred_region
      %38 = vsyncadd [#allocation5], 0
      %s39 = sshll.u32 %s5, 4
      %s40 = int_to_ptr.hbm [resolvable:$true] %s39
      %s41 = sshll.u32 [#allocation4], 4
      %s42 = int_to_ptr.vmem [resolvable:$true] %s41
      %47 = dma.hbm_to_vmem [thread:$0]  %s40, 8192, %s42, [#allocation5], 128, 128, 8
    $region25: #{intra_transformer_forward.9} parent=1 // pred_fallthru
      _
    // Predicated region
    $region26: #{intra_transformer_forward.9} parent=1 // pred_check
      _
    $region27: #{intra_transformer_forward.9} parent=1 // pred_check_branch
      %49 = sbr.rel (0) target = $region29
    $region28: #{intra_transformer_forward.9} parent=1 // pred_region
      _
    $region29: #{intra_transformer_forward.9} parent=1 // pred_fallthru
      _
    // Predicated region
    $region30: #{intra_transformer_forward.9} parent=1 // pred_check
      _
    $region31: #{intra_transformer_forward.9} parent=1 // pred_check_branch
      %51 = sbr.rel (0) target = $region33
    $region32: #{intra_transformer_forward.9} parent=1 // pred_region
      %53 = dma.done [#allocation3], 8192
    $region33: #{intra_transformer_forward.9} parent=1 // pred_fallthru
      _
    // Predicated region
    $region34: #{intra_transformer_forward.9} parent=1 // pred_check
      _
    $region35: #{intra_transformer_forward.9} parent=1 // pred_check_branch
      %55 = sbr.rel (0) target = $region37
    $region36: #{intra_transformer_forward.9} parent=1 // pred_region
      %57 = dma.done [#allocation5], 8192
    $region37: #{intra_transformer_forward.9} parent=1 // pred_fallthru
      _
    %v58 = vld [vmem:[%s0] sm:$0xff]
    %v59 = vld [vmem:[%s0 + $0x8] sm:$0xff]
    %v60 = vld [vmem:[%s0 + $0x10] sm:$0xff]
    %v61 = vld [vmem:[%s0 + $0x18] sm:$0xff]
    %62 = vadd.xlane.f32.xlu0 %v58
    %v63 = vpop.xlane.xlu0 %62
    %64 = vadd.xlane.f32.xlu0 %v59
    %v65 = vpop.xlane.xlu0 %64
    %66 = vadd.xlane.f32.xlu0 %v60
    %v67 = vpop.xlane.xlu0 %66
    %68 = vadd.xlane.f32.xlu0 %v61
    %v69 = vpop.xlane.xlu0 %68
    %v70 = vrcp.pop 128.0
    %v71 = vmul.f32 128.0, %v70
    %v72 = vsub.f32 1.0, %v71
    %v73 = vmul.f32 %v70, %v72
    %v74 = vadd.f32 %v70, %v73
    %vm75 = vweird.f32 %v70
    %v76 = vsel %vm75, %v70, %v74
    %v77 = vmul.f32 %v63, %v76
    %v78 = vmul.f32 %v65, %v76
    %v79 = vmul.f32 %v67, %v76
    %v80 = vmul.f32 %v69, %v76
    %v81 = vsub.f32 %v58, %v77
    %v82 = vsub.f32 %v59, %v78
    %v83 = vsub.f32 %v60, %v79
    %v84 = vsub.f32 %v61, %v80
    %v85 = vmul.f32 %v81, %v81
    %v86 = vmul.f32 %v82, %v82
    %v87 = vmul.f32 %v83, %v83
    %v88 = vmul.f32 %v84, %v84
    %89 = vadd.xlane.f32.xlu0 %v85
    %v90 = vpop.xlane.xlu0 %89
    %91 = vadd.xlane.f32.xlu0 %v86
    %v92 = vpop.xlane.xlu0 %91
    %93 = vadd.xlane.f32.xlu0 %v87
    %v94 = vpop.xlane.xlu0 %93
    %95 = vadd.xlane.f32.xlu0 %v88
    %v96 = vpop.xlane.xlu0 %95
    %v97 = vmul.f32 %v90, %v76
    %v98 = vmul.f32 %v92, %v76
    %v99 = vmul.f32 %v94, %v76
    %v100 = vmul.f32 %v96, %v76
    %v101 = vadd.f32 %v97, 1e-06
    %v102 = vadd.f32 %v98, 1e-06
    %v103 = vadd.f32 %v99, 1e-06
    %v104 = vadd.f32 %v100, 1e-06
    %v105 = vrsqrt.pop %v101
    %v106 = vmul.f32 %v105, %v101
    %v107 = vmul.f32 %v106, %v105
    %v108 = vmul.f32 0.5, %v107
    %v109 = vsub.f32 1.5, %v108
    %v110 = vmul.f32 %v105, %v109
    %vm111 = vweird.f32 %v101
    %vm112 = vweird.f32 %v105
    %vm113 = vmor %vm111, %vm112
    %v114 = vsel %vm113, %v105, %v110
    %v115 = vrsqrt.pop %v102
    %v116 = vmul.f32 %v115, %v102
    %v117 = vmul.f32 %v116, %v115
    %v118 = vmul.f32 0.5, %v117
    %v119 = vsub.f32 1.5, %v118
    %v120 = vmul.f32 %v115, %v119
    %vm121 = vweird.f32 %v102
    %vm122 = vweird.f32 %v115
    %vm123 = vmor %vm121, %vm122
    %v124 = vsel %vm123, %v115, %v120
    %v125 = vrsqrt.pop %v103
    %v126 = vmul.f32 %v125, %v103
    %v127 = vmul.f32 %v126, %v125
    %v128 = vmul.f32 0.5, %v127
    %v129 = vsub.f32 1.5, %v128
    %v130 = vmul.f32 %v125, %v129
    %vm131 = vweird.f32 %v103
    %vm132 = vweird.f32 %v125
    %vm133 = vmor %vm131, %vm132
    %v134 = vsel %vm133, %v125, %v130
    %v135 = vrsqrt.pop %v104
    %v136 = vmul.f32 %v135, %v104
    %v137 = vmul.f32 %v136, %v135
    %v138 = vmul.f32 0.5, %v137
    %v139 = vsub.f32 1.5, %v138
    %v140 = vmul.f32 %v135, %v139
    %vm141 = vweird.f32 %v104
    %vm142 = vweird.f32 %v135
    %vm143 = vmor %vm141, %vm142
    %v144 = vsel %vm143, %v135, %v140
    %v145 = vmul.f32 %v81, %v114
    %v146 = vmul.f32 %v82, %v124
    %v147 = vmul.f32 %v83, %v134
    %v148 = vmul.f32 %v84, %v144
    %v149 = vld [vmem:[%s1] sm:$0x1]
    %v151 = vperm.slane %v149, 0
    %v153 = vmul.f32 %v145, %v151
    %v154 = vmul.f32 %v146, %v151
    %v155 = vmul.f32 %v147, %v151
    %v156 = vmul.f32 %v148, %v151
    %v157 = vld [vmem:[%s2] sm:$0x1]
    %v159 = vperm.slane %v157, 0
    %v161 = vadd.f32 %v153, %v159
    %v162 = vadd.f32 %v154, %v159
    %v163 = vadd.f32 %v155, %v159
    %v164 = vadd.f32 %v156, %v159
    %v165 = vld [vmem:[#allocation2] sm:$0xff]
    %v166 = vld [vmem:[#allocation2 + $0x8] sm:$0xff]
    %v167 = vld [vmem:[#allocation2 + $0x10] sm:$0xff]
    %v168 = vld [vmem:[#allocation2 + $0x18] sm:$0xff]
    %v169 = vld [vmem:[#allocation2 + $0x20] sm:$0xff]
    %v170 = vld [vmem:[#allocation2 + $0x28] sm:$0xff]
    %v171 = vld [vmem:[#allocation2 + $0x30] sm:$0xff]
    %v172 = vld [vmem:[#allocation2 + $0x38] sm:$0xff]
    %v173 = vld [vmem:[#allocation2 + $0x40] sm:$0xff]
    %v174 = vld [vmem:[#allocation2 + $0x48] sm:$0xff]
    %v175 = vld [vmem:[#allocation2 + $0x50] sm:$0xff]
    %v176 = vld [vmem:[#allocation2 + $0x58] sm:$0xff]
    %v177 = vld [vmem:[#allocation2 + $0x60] sm:$0xff]
    %v178 = vld [vmem:[#allocation2 + $0x68] sm:$0xff]
    %v179 = vld [vmem:[#allocation2 + $0x70] sm:$0xff]
    %v180 = vld [vmem:[#allocation2 + $0x78] sm:$0xff]
    %v181 = vld [vmem:[#allocation2 + $0x80] sm:$0xff]
    %v182 = vld [vmem:[#allocation2 + $0x88] sm:$0xff]
    %v183 = vld [vmem:[#allocation2 + $0x90] sm:$0xff]
    %v184 = vld [vmem:[#allocation2 + $0x98] sm:$0xff]
    %v185 = vld [vmem:[#allocation2 + $0xa0] sm:$0xff]
    %v186 = vld [vmem:[#allocation2 + $0xa8] sm:$0xff]
    %v187 = vld [vmem:[#allocation2 + $0xb0] sm:$0xff]
    %v188 = vld [vmem:[#allocation2 + $0xb8] sm:$0xff]
    %v189 = vld [vmem:[#allocation2 + $0xc0] sm:$0xff]
    %v190 = vld [vmem:[#allocation2 + $0xc8] sm:$0xff]
    %v191 = vld [vmem:[#allocation2 + $0xd0] sm:$0xff]
    %v192 = vld [vmem:[#allocation2 + $0xd8] sm:$0xff]
    %v193 = vld [vmem:[#allocation2 + $0xe0] sm:$0xff]
    %v194 = vld [vmem:[#allocation2 + $0xe8] sm:$0xff]
    %v195 = vld [vmem:[#allocation2 + $0xf0] sm:$0xff]
    %v196 = vld [vmem:[#allocation2 + $0xf8] sm:$0xff]
    %v197 = vld [vmem:[#allocation2 + $0x100] sm:$0xff]
    %v198 = vld [vmem:[#allocation2 + $0x108] sm:$0xff]
    %v199 = vld [vmem:[#allocation2 + $0x110] sm:$0xff]
    %v200 = vld [vmem:[#allocation2 + $0x118] sm:$0xff]
    %v201 = vld [vmem:[#allocation2 + $0x120] sm:$0xff]
    %v202 = vld [vmem:[#allocation2 + $0x128] sm:$0xff]
    %v203 = vld [vmem:[#allocation2 + $0x130] sm:$0xff]
    %v204 = vld [vmem:[#allocation2 + $0x138] sm:$0xff]
    %v205 = vld [vmem:[#allocation2 + $0x140] sm:$0xff]
    %v206 = vld [vmem:[#allocation2 + $0x148] sm:$0xff]
    %v207 = vld [vmem:[#allocation2 + $0x150] sm:$0xff]
    %v208 = vld [vmem:[#allocation2 + $0x158] sm:$0xff]
    %v209 = vld [vmem:[#allocation2 + $0x160] sm:$0xff]
    %v210 = vld [vmem:[#allocation2 + $0x168] sm:$0xff]
    %v211 = vld [vmem:[#allocation2 + $0x170] sm:$0xff]
    %v212 = vld [vmem:[#allocation2 + $0x178] sm:$0xff]
    %v213 = vld [vmem:[#allocation2 + $0x180] sm:$0xff]
    %v214 = vld [vmem:[#allocation2 + $0x188] sm:$0xff]
    %v215 = vld [vmem:[#allocation2 + $0x190] sm:$0xff]
    %v216 = vld [vmem:[#allocation2 + $0x198] sm:$0xff]
    %v217 = vld [vmem:[#allocation2 + $0x1a0] sm:$0xff]
    %v218 = vld [vmem:[#allocation2 + $0x1a8] sm:$0xff]
    %v219 = vld [vmem:[#allocation2 + $0x1b0] sm:$0xff]
    %v220 = vld [vmem:[#allocation2 + $0x1b8] sm:$0xff]
    %v221 = vld [vmem:[#allocation2 + $0x1c0] sm:$0xff]
    %v222 = vld [vmem:[#allocation2 + $0x1c8] sm:$0xff]
    %v223 = vld [vmem:[#allocation2 + $0x1d0] sm:$0xff]
    %v224 = vld [vmem:[#allocation2 + $0x1d8] sm:$0xff]
    %v225 = vld [vmem:[#allocation2 + $0x1e0] sm:$0xff]
    %v226 = vld [vmem:[#allocation2 + $0x1e8] sm:$0xff]
    %v227 = vld [vmem:[#allocation2 + $0x1f0] sm:$0xff]
    %v228 = vld [vmem:[#allocation2 + $0x1f8] sm:$0xff]
    %v229 = vld [vmem:[%s4] sm:$0xf]
    %v231 = vperm.slane %v229, 0
    %v232 = vperm.slane %v229, 1
    %v233 = vperm.slane %v229, 2
    %v234 = vperm.slane %v229, 3
    %239 = vmatpush.msra.mxu0 %v225
    %240 = vmatpush.msra.mxu0 %v221
    %241 = vmatpush.msra.mxu0 %v217
    %242 = vmatpush.msra.mxu0 %v213
    %243 = vmatpush.msra.mxu0 %v209
    %244 = vmatpush.msra.mxu0 %v205
    %245 = vmatpush.msra.mxu0 %v201
    %246 = vmatpush.msra.mxu0 %v197
    %247 = vmatpush.msra.mxu0 %v193
    %248 = vmatpush.msra.mxu0 %v189
    %249 = vmatpush.msra.mxu0 %v185
    %250 = vmatpush.msra.mxu0 %v181
    %251 = vmatpush.msra.mxu0 %v177
    %252 = vmatpush.msra.mxu0 %v173
    %253 = vmatpush.msra.mxu0 %v169
    %254 = vmatpush.msra.mxu0 %v165
    %255 = vmatmul.f32.gmra.mxu0 %v161
    %v256 = vpop.f32.mrf.mxu0
    %v257 = vadd.f32 %v231, %v256
    %258 = vmatmul.f32.gmra.mxu0 %v162
    %v259 = vpop.f32.mrf.mxu0
    %v260 = vadd.f32 %v231, %v259
    %261 = vmatmul.f32.gmra.mxu0 %v163
    %v262 = vpop.f32.mrf.mxu0
    %v263 = vadd.f32 %v231, %v262
    %264 = vmatmul.f32.gmra.mxu0 %v164
    %v265 = vpop.f32.mrf.mxu0
    %v266 = vadd.f32 %v231, %v265
    %267 = vdwg.mxu0
    %268 = vmatpush.msra.mxu0 %v226
    %269 = vmatpush.msra.mxu0 %v222
    %270 = vmatpush.msra.mxu0 %v218
    %271 = vmatpush.msra.mxu0 %v214
    %272 = vmatpush.msra.mxu0 %v210
    %273 = vmatpush.msra.mxu0 %v206
    %274 = vmatpush.msra.mxu0 %v202
    %275 = vmatpush.msra.mxu0 %v198
    %276 = vmatpush.msra.mxu0 %v194
    %277 = vmatpush.msra.mxu0 %v190
    %278 = vmatpush.msra.mxu0 %v186
    %279 = vmatpush.msra.mxu0 %v182
    %280 = vmatpush.msra.mxu0 %v178
    %281 = vmatpush.msra.mxu0 %v174
    %282 = vmatpush.msra.mxu0 %v170
    %283 = vmatpush.msra.mxu0 %v166
    %284 = vmatmul.f32.gmra.mxu0 %v161
    %v285 = vpop.f32.mrf.mxu0
    %v286 = vadd.f32 %v232, %v285
    %287 = vmatmul.f32.gmra.mxu0 %v162
    %v288 = vpop.f32.mrf.mxu0
    %v289 = vadd.f32 %v232, %v288
    %290 = vmatmul.f32.gmra.mxu0 %v163
    %v291 = vpop.f32.mrf.mxu0
    %v292 = vadd.f32 %v232, %v291
    %293 = vmatmul.f32.gmra.mxu0 %v164
    %v294 = vpop.f32.mrf.mxu0
    %v295 = vadd.f32 %v232, %v294
    %296 = vdwg.mxu0
    %297 = vmatpush.msra.mxu0 %v227
    %298 = vmatpush.msra.mxu0 %v223
    %299 = vmatpush.msra.mxu0 %v219
    %300 = vmatpush.msra.mxu0 %v215
    %301 = vmatpush.msra.mxu0 %v211
    %302 = vmatpush.msra.mxu0 %v207
    %303 = vmatpush.msra.mxu0 %v203
    %304 = vmatpush.msra.mxu0 %v199
    %305 = vmatpush.msra.mxu0 %v195
    %306 = vmatpush.msra.mxu0 %v191
    %307 = vmatpush.msra.mxu0 %v187
    %308 = vmatpush.msra.mxu0 %v183
    %309 = vmatpush.msra.mxu0 %v179
    %310 = vmatpush.msra.mxu0 %v175
    %311 = vmatpush.msra.mxu0 %v171
    %312 = vmatpush.msra.mxu0 %v167
    %313 = vmatmul.f32.gmra.mxu0 %v161
    %v314 = vpop.f32.mrf.mxu0
    %v315 = vadd.f32 %v233, %v314
    %316 = vmatmul.f32.gmra.mxu0 %v162
    %v317 = vpop.f32.mrf.mxu0
    %v318 = vadd.f32 %v233, %v317
    %319 = vmatmul.f32.gmra.mxu0 %v163
    %v320 = vpop.f32.mrf.mxu0
    %v321 = vadd.f32 %v233, %v320
    %322 = vmatmul.f32.gmra.mxu0 %v164
    %v323 = vpop.f32.mrf.mxu0
    %v324 = vadd.f32 %v233, %v323
    %325 = vdwg.mxu0
    %326 = vmatpush.msra.mxu0 %v228
    %327 = vmatpush.msra.mxu0 %v224
    %328 = vmatpush.msra.mxu0 %v220
    %329 = vmatpush.msra.mxu0 %v216
    %330 = vmatpush.msra.mxu0 %v212
    %331 = vmatpush.msra.mxu0 %v208
    %332 = vmatpush.msra.mxu0 %v204
    %333 = vmatpush.msra.mxu0 %v200
    %334 = vmatpush.msra.mxu0 %v196
    %335 = vmatpush.msra.mxu0 %v192
    %336 = vmatpush.msra.mxu0 %v188
    %337 = vmatpush.msra.mxu0 %v184
    %338 = vmatpush.msra.mxu0 %v180
    %339 = vmatpush.msra.mxu0 %v176
    %340 = vmatpush.msra.mxu0 %v172
    %341 = vmatpush.msra.mxu0 %v168
    %342 = vmatmul.f32.gmra.mxu0 %v161
    %v343 = vpop.f32.mrf.mxu0
    %v344 = vadd.f32 %v234, %v343
    %345 = vmatmul.f32.gmra.mxu0 %v162
    %v346 = vpop.f32.mrf.mxu0
    %v347 = vadd.f32 %v234, %v346
    %348 = vmatmul.f32.gmra.mxu0 %v163
    %v349 = vpop.f32.mrf.mxu0
    %v350 = vadd.f32 %v234, %v349
    %351 = vmatmul.f32.gmra.mxu0 %v164
    %v352 = vpop.f32.mrf.mxu0
    %v353 = vadd.f32 %v234, %v352
    %354 = vdwg.mxu0
    %v355 = vmul.f32 %v257, 0.5
    %v356 = vmul.f32 %v286, 0.5
    %v357 = vmul.f32 %v315, 0.5
    %v358 = vmul.f32 %v344, 0.5
    %v359 = vmul.f32 %v260, 0.5
    %v360 = vmul.f32 %v289, 0.5
    %v361 = vmul.f32 %v318, 0.5
    %v362 = vmul.f32 %v347, 0.5
    %v363 = vmul.f32 %v263, 0.5
    %v364 = vmul.f32 %v292, 0.5
    %v365 = vmul.f32 %v321, 0.5
    %v366 = vmul.f32 %v350, 0.5
    %v367 = vmul.f32 %v266, 0.5
    %v368 = vmul.f32 %v295, 0.5
    %v369 = vmul.f32 %v324, 0.5
    %v370 = vmul.f32 %v353, 0.5
    %v371 = vmul.f32 %v257, 0.044715
    %v372 = vmul.f32 %v286, 0.044715
    %v373 = vmul.f32 %v315, 0.044715
    %v374 = vmul.f32 %v344, 0.044715
    %v375 = vmul.f32 %v260, 0.044715
    %v376 = vmul.f32 %v289, 0.044715
    %v377 = vmul.f32 %v318, 0.044715
    %v378 = vmul.f32 %v347, 0.044715
    %v379 = vmul.f32 %v263, 0.044715
    %v380 = vmul.f32 %v292, 0.044715
    %v381 = vmul.f32 %v321, 0.044715
    %v382 = vmul.f32 %v350, 0.044715
    %v383 = vmul.f32 %v266, 0.044715
    %v384 = vmul.f32 %v295, 0.044715
    %v385 = vmul.f32 %v324, 0.044715
    %v386 = vmul.f32 %v353, 0.044715
    %v387 = vmul.f32 %v371, %v257
    %v388 = vmul.f32 %v372, %v286
    %v389 = vmul.f32 %v373, %v315
    %v390 = vmul.f32 %v374, %v344
    %v391 = vmul.f32 %v375, %v260
    %v392 = vmul.f32 %v376, %v289
    %v393 = vmul.f32 %v377, %v318
    %v394 = vmul.f32 %v378, %v347
    %v395 = vmul.f32 %v379, %v263
    %v396 = vmul.f32 %v380, %v292
    %v397 = vmul.f32 %v381, %v321
    %v398 = vmul.f32 %v382, %v350
    %v399 = vmul.f32 %v383, %v266
    %v400 = vmul.f32 %v384, %v295
    %v401 = vmul.f32 %v385, %v324
    %v402 = vmul.f32 %v386, %v353
    %v403 = vmul.f32 %v387, %v257
    %v404 = vmul.f32 %v388, %v286
    %v405 = vmul.f32 %v389, %v315
    %v406 = vmul.f32 %v390, %v344
    %v407 = vmul.f32 %v391, %v260
    %v408 = vmul.f32 %v392, %v289
    %v409 = vmul.f32 %v393, %v318
    %v410 = vmul.f32 %v394, %v347
    %v411 = vmul.f32 %v395, %v263
    %v412 = vmul.f32 %v396, %v292
    %v413 = vmul.f32 %v397, %v321
    %v414 = vmul.f32 %v398, %v350
    %v415 = vmul.f32 %v399, %v266
    %v416 = vmul.f32 %v400, %v295
    %v417 = vmul.f32 %v401, %v324
    %v418 = vmul.f32 %v402, %v353
    %v419 = vadd.f32 %v257, %v403
    %v420 = vadd.f32 %v286, %v404
    %v421 = vadd.f32 %v315, %v405
    %v422 = vadd.f32 %v344, %v406
    %v423 = vadd.f32 %v260, %v407
    %v424 = vadd.f32 %v289, %v408
    %v425 = vadd.f32 %v318, %v409
    %v426 = vadd.f32 %v347, %v410
    %v427 = vadd.f32 %v263, %v411
    %v428 = vadd.f32 %v292, %v412
    %v429 = vadd.f32 %v321, %v413
    %v430 = vadd.f32 %v350, %v414
    %v431 = vadd.f32 %v266, %v415
    %v432 = vadd.f32 %v295, %v416
    %v433 = vadd.f32 %v324, %v417
    %v434 = vadd.f32 %v353, %v418
    %v435 = vmul.f32 %v419, 0.7978846
    %v436 = vmul.f32 %v420, 0.7978846
    %v437 = vmul.f32 %v421, 0.7978846
    %v438 = vmul.f32 %v422, 0.7978846
    %v439 = vmul.f32 %v423, 0.7978846
    %v440 = vmul.f32 %v424, 0.7978846
    %v441 = vmul.f32 %v425, 0.7978846
    %v442 = vmul.f32 %v426, 0.7978846
    %v443 = vmul.f32 %v427, 0.7978846
    %v444 = vmul.f32 %v428, 0.7978846
    %v445 = vmul.f32 %v429, 0.7978846
    %v446 = vmul.f32 %v430, 0.7978846
    %v447 = vmul.f32 %v431, 0.7978846
    %v448 = vmul.f32 %v432, 0.7978846
    %v449 = vmul.f32 %v433, 0.7978846
    %v450 = vmul.f32 %v434, 0.7978846
    %v451 = vtanh.pop %v435
    %v452 = vtanh.pop %v436
    %v453 = vtanh.pop %v437
    %v454 = vtanh.pop %v438
    %v455 = vtanh.pop %v439
    %v456 = vtanh.pop %v440
    %v457 = vtanh.pop %v441
    %v458 = vtanh.pop %v442
    %v459 = vtanh.pop %v443
    %v460 = vtanh.pop %v444
    %v461 = vtanh.pop %v445
    %v462 = vtanh.pop %v446
    %v463 = vtanh.pop %v447
    %v464 = vtanh.pop %v448
    %v465 = vtanh.pop %v449
    %v466 = vtanh.pop %v450
    %v467 = vadd.f32 %v451, 1.0
    %v468 = vadd.f32 %v452, 1.0
    %v469 = vadd.f32 %v453, 1.0
    %v470 = vadd.f32 %v454, 1.0
    %v471 = vadd.f32 %v455, 1.0
    %v472 = vadd.f32 %v456, 1.0
    %v473 = vadd.f32 %v457, 1.0
    %v474 = vadd.f32 %v458, 1.0
    %v475 = vadd.f32 %v459, 1.0
    %v476 = vadd.f32 %v460, 1.0
    %v477 = vadd.f32 %v461, 1.0
    %v478 = vadd.f32 %v462, 1.0
    %v479 = vadd.f32 %v463, 1.0
    %v480 = vadd.f32 %v464, 1.0
    %v481 = vadd.f32 %v465, 1.0
    %v482 = vadd.f32 %v466, 1.0
    %v483 = vmul.f32 %v355, %v467
    %v484 = vmul.f32 %v356, %v468
    %v485 = vmul.f32 %v357, %v469
    %v486 = vmul.f32 %v358, %v470
    %v487 = vmul.f32 %v359, %v471
    %v488 = vmul.f32 %v360, %v472
    %v489 = vmul.f32 %v361, %v473
    %v490 = vmul.f32 %v362, %v474
    %v491 = vmul.f32 %v363, %v475
    %v492 = vmul.f32 %v364, %v476
    %v493 = vmul.f32 %v365, %v477
    %v494 = vmul.f32 %v366, %v478
    %v495 = vmul.f32 %v367, %v479
    %v496 = vmul.f32 %v368, %v480
    %v497 = vmul.f32 %v369, %v481
    %v498 = vmul.f32 %v370, %v482
    %v499 = vld [vmem:[#allocation4] sm:$0xff]
    %v500 = vld [vmem:[#allocation4 + $0x8] sm:$0xff]
    %v501 = vld [vmem:[#allocation4 + $0x10] sm:$0xff]
    %v502 = vld [vmem:[#allocation4 + $0x18] sm:$0xff]
    %v503 = vld [vmem:[#allocation4 + $0x20] sm:$0xff]
    %v504 = vld [vmem:[#allocation4 + $0x28] sm:$0xff]
    %v505 = vld [vmem:[#allocation4 + $0x30] sm:$0xff]
    %v506 = vld [vmem:[#allocation4 + $0x38] sm:$0xff]
    %v507 = vld [vmem:[#allocation4 + $0x40] sm:$0xff]
    %v508 = vld [vmem:[#allocation4 + $0x48] sm:$0xff]
    %v509 = vld [vmem:[#allocation4 + $0x50] sm:$0xff]
    %v510 = vld [vmem:[#allocation4 + $0x58] sm:$0xff]
    %v511 = vld [vmem:[#allocation4 + $0x60] sm:$0xff]
    %v512 = vld [vmem:[#allocation4 + $0x68] sm:$0xff]
    %v513 = vld [vmem:[#allocation4 + $0x70] sm:$0xff]
    %v514 = vld [vmem:[#allocation4 + $0x78] sm:$0xff]
    %v515 = vld [vmem:[#allocation4 + $0x80] sm:$0xff]
    %v516 = vld [vmem:[#allocation4 + $0x88] sm:$0xff]
    %v517 = vld [vmem:[#allocation4 + $0x90] sm:$0xff]
    %v518 = vld [vmem:[#allocation4 + $0x98] sm:$0xff]
    %v519 = vld [vmem:[#allocation4 + $0xa0] sm:$0xff]
    %v520 = vld [vmem:[#allocation4 + $0xa8] sm:$0xff]
    %v521 = vld [vmem:[#allocation4 + $0xb0] sm:$0xff]
    %v522 = vld [vmem:[#allocation4 + $0xb8] sm:$0xff]
    %v523 = vld [vmem:[#allocation4 + $0xc0] sm:$0xff]
    %v524 = vld [vmem:[#allocation4 + $0xc8] sm:$0xff]
    %v525 = vld [vmem:[#allocation4 + $0xd0] sm:$0xff]
    %v526 = vld [vmem:[#allocation4 + $0xd8] sm:$0xff]
    %v527 = vld [vmem:[#allocation4 + $0xe0] sm:$0xff]
    %v528 = vld [vmem:[#allocation4 + $0xe8] sm:$0xff]
    %v529 = vld [vmem:[#allocation4 + $0xf0] sm:$0xff]
    %v530 = vld [vmem:[#allocation4 + $0xf8] sm:$0xff]
    %v531 = vld [vmem:[#allocation4 + $0x100] sm:$0xff]
    %v532 = vld [vmem:[#allocation4 + $0x108] sm:$0xff]
    %v533 = vld [vmem:[#allocation4 + $0x110] sm:$0xff]
    %v534 = vld [vmem:[#allocation4 + $0x118] sm:$0xff]
    %v535 = vld [vmem:[#allocation4 + $0x120] sm:$0xff]
    %v536 = vld [vmem:[#allocation4 + $0x128] sm:$0xff]
    %v537 = vld [vmem:[#allocation4 + $0x130] sm:$0xff]
    %v538 = vld [vmem:[#allocation4 + $0x138] sm:$0xff]
    %v539 = vld [vmem:[#allocation4 + $0x140] sm:$0xff]
    %v540 = vld [vmem:[#allocation4 + $0x148] sm:$0xff]
    %v541 = vld [vmem:[#allocation4 + $0x150] sm:$0xff]
    %v542 = vld [vmem:[#allocation4 + $0x158] sm:$0xff]
    %v543 = vld [vmem:[#allocation4 + $0x160] sm:$0xff]
    %v544 = vld [vmem:[#allocation4 + $0x168] sm:$0xff]
    %v545 = vld [vmem:[#allocation4 + $0x170] sm:$0xff]
    %v546 = vld [vmem:[#allocation4 + $0x178] sm:$0xff]
    %v547 = vld [vmem:[#allocation4 + $0x180] sm:$0xff]
    %v548 = vld [vmem:[#allocation4 + $0x188] sm:$0xff]
    %v549 = vld [vmem:[#allocation4 + $0x190] sm:$0xff]
    %v550 = vld [vmem:[#allocation4 + $0x198] sm:$0xff]
    %v551 = vld [vmem:[#allocation4 + $0x1a0] sm:$0xff]
    %v552 = vld [vmem:[#allocation4 + $0x1a8] sm:$0xff]
    %v553 = vld [vmem:[#allocation4 + $0x1b0] sm:$0xff]
    %v554 = vld [vmem:[#allocation4 + $0x1b8] sm:$0xff]
    %v555 = vld [vmem:[#allocation4 + $0x1c0] sm:$0xff]
    %v556 = vld [vmem:[#allocation4 + $0x1c8] sm:$0xff]
    %v557 = vld [vmem:[#allocation4 + $0x1d0] sm:$0xff]
    %v558 = vld [vmem:[#allocation4 + $0x1d8] sm:$0xff]
    %v559 = vld [vmem:[#allocation4 + $0x1e0] sm:$0xff]
    %v560 = vld [vmem:[#allocation4 + $0x1e8] sm:$0xff]
    %v561 = vld [vmem:[#allocation4 + $0x1f0] sm:$0xff]
    %v562 = vld [vmem:[#allocation4 + $0x1f8] sm:$0xff]
    %v563 = vld [vmem:[%s6] sm:$0x1]
    %v565 = vperm.slane %v563, 0
    %567 = vmatpush.msra.mxu0 %v514
    %568 = vmatpush.msra.mxu0 %v513
    %569 = vmatpush.msra.mxu0 %v512
    %570 = vmatpush.msra.mxu0 %v511
    %571 = vmatpush.msra.mxu0 %v510
    %572 = vmatpush.msra.mxu0 %v509
    %573 = vmatpush.msra.mxu0 %v508
    %574 = vmatpush.msra.mxu0 %v507
    %575 = vmatpush.msra.mxu0 %v506
    %576 = vmatpush.msra.mxu0 %v505
    %577 = vmatpush.msra.mxu0 %v504
    %578 = vmatpush.msra.mxu0 %v503
    %579 = vmatpush.msra.mxu0 %v502
    %580 = vmatpush.msra.mxu0 %v501
    %581 = vmatpush.msra.mxu0 %v500
    %582 = vmatpush.msra.mxu0 %v499
    %583 = vmatmul.f32.gmra.mxu0 %v483
    %v584 = vpop.f32.mrf.mxu0
    %v585 = vadd.f32 %v565, %v584
    %586 = vmatmul.f32.gmra.mxu0 %v487
    %v587 = vpop.f32.mrf.mxu0
    %v588 = vadd.f32 %v565, %v587
    %589 = vmatmul.f32.gmra.mxu0 %v491
    %v590 = vpop.f32.mrf.mxu0
    %v591 = vadd.f32 %v565, %v590
    %592 = vmatmul.f32.gmra.mxu0 %v495
    %v593 = vpop.f32.mrf.mxu0
    %v594 = vadd.f32 %v565, %v593
    %595 = vdwg.mxu0
    %596 = vmatpush.msra.mxu0 %v530
    %597 = vmatpush.msra.mxu0 %v529
    %598 = vmatpush.msra.mxu0 %v528
    %599 = vmatpush.msra.mxu0 %v527
    %600 = vmatpush.msra.mxu0 %v526
    %601 = vmatpush.msra.mxu0 %v525
    %602 = vmatpush.msra.mxu0 %v524
    %603 = vmatpush.msra.mxu0 %v523
    %604 = vmatpush.msra.mxu0 %v522
    %605 = vmatpush.msra.mxu0 %v521
    %606 = vmatpush.msra.mxu0 %v520
    %607 = vmatpush.msra.mxu0 %v519
    %608 = vmatpush.msra.mxu0 %v518
    %609 = vmatpush.msra.mxu0 %v517
    %610 = vmatpush.msra.mxu0 %v516
    %611 = vmatpush.msra.mxu0 %v515
    %612 = vmatmul.f32.gmra.mxu0 %v484
    %v613 = vpop.f32.mrf.mxu0
    %v614 = vadd.f32 %v585, %v613
    %615 = vmatmul.f32.gmra.mxu0 %v488
    %v616 = vpop.f32.mrf.mxu0
    %v617 = vadd.f32 %v588, %v616
    %618 = vmatmul.f32.gmra.mxu0 %v492
    %v619 = vpop.f32.mrf.mxu0
    %v620 = vadd.f32 %v591, %v619
    %621 = vmatmul.f32.gmra.mxu0 %v496
    %v622 = vpop.f32.mrf.mxu0
    %v623 = vadd.f32 %v594, %v622
    %624 = vdwg.mxu0
    %625 = vmatpush.msra.mxu0 %v546
    %626 = vmatpush.msra.mxu0 %v545
    %627 = vmatpush.msra.mxu0 %v544
    %628 = vmatpush.msra.mxu0 %v543
    %629 = vmatpush.msra.mxu0 %v542
    %630 = vmatpush.msra.mxu0 %v541
    %631 = vmatpush.msra.mxu0 %v540
    %632 = vmatpush.msra.mxu0 %v539
    %633 = vmatpush.msra.mxu0 %v538
    %634 = vmatpush.msra.mxu0 %v537
    %635 = vmatpush.msra.mxu0 %v536
    %636 = vmatpush.msra.mxu0 %v535
    %637 = vmatpush.msra.mxu0 %v534
    %638 = vmatpush.msra.mxu0 %v533
    %639 = vmatpush.msra.mxu0 %v532
    %640 = vmatpush.msra.mxu0 %v531
    %641 = vmatmul.f32.gmra.mxu0 %v485
    %v642 = vpop.f32.mrf.mxu0
    %v643 = vadd.f32 %v614, %v642
    %644 = vmatmul.f32.gmra.mxu0 %v489
    %v645 = vpop.f32.mrf.mxu0
    %v646 = vadd.f32 %v617, %v645
    %647 = vmatmul.f32.gmra.mxu0 %v493
    %v648 = vpop.f32.mrf.mxu0
    %v649 = vadd.f32 %v620, %v648
    %650 = vmatmul.f32.gmra.mxu0 %v497
    %v651 = vpop.f32.mrf.mxu0
    %v652 = vadd.f32 %v623, %v651
    %653 = vdwg.mxu0
    %654 = vmatpush.msra.mxu0 %v562
    %655 = vmatpush.msra.mxu0 %v561
    %656 = vmatpush.msra.mxu0 %v560
    %657 = vmatpush.msra.mxu0 %v559
    %658 = vmatpush.msra.mxu0 %v558
    %659 = vmatpush.msra.mxu0 %v557
    %660 = vmatpush.msra.mxu0 %v556
    %661 = vmatpush.msra.mxu0 %v555
    %662 = vmatpush.msra.mxu0 %v554
    %663 = vmatpush.msra.mxu0 %v553
    %664 = vmatpush.msra.mxu0 %v552
    %665 = vmatpush.msra.mxu0 %v551
    %666 = vmatpush.msra.mxu0 %v550
    %667 = vmatpush.msra.mxu0 %v549
    %668 = vmatpush.msra.mxu0 %v548
    %669 = vmatpush.msra.mxu0 %v547
    %670 = vmatmul.f32.gmra.mxu0 %v486
    %v671 = vpop.f32.mrf.mxu0
    %v672 = vadd.f32 %v643, %v671
    %673 = vmatmul.f32.gmra.mxu0 %v490
    %v674 = vpop.f32.mrf.mxu0
    %v675 = vadd.f32 %v646, %v674
    %676 = vmatmul.f32.gmra.mxu0 %v494
    %v677 = vpop.f32.mrf.mxu0
    %v678 = vadd.f32 %v649, %v677
    %679 = vmatmul.f32.gmra.mxu0 %v498
    %v680 = vpop.f32.mrf.mxu0
    %v681 = vadd.f32 %v652, %v680
    %682 = vdwg.mxu0
    %v683 = vadd.f32 %v672, %v58
    %v684 = vadd.f32 %v675, %v59
    %v685 = vadd.f32 %v678, %v60
    %v686 = vadd.f32 %v681, %v61
    %687 = vst [vmem:[%s7] sm:$0xff] %v683
    %688 = vst [vmem:[%s7 + $0x8] sm:$0xff] %v684
    %689 = vst [vmem:[%s7 + $0x10] sm:$0xff] %v685
    %690 = vst [vmem:[%s7 + $0x18] sm:$0xff] %v686
    // Predicated region
    $region38: #{intra_transformer_forward.9} parent=1 // pred_check
      _
    $region39: #{intra_transformer_forward.9} parent=1 // pred_check_branch
      %692 = sbr.rel (0) target = $region41
    $region40: #{intra_transformer_forward.9} parent=1 // pred_region
      _
    $region41: #{intra_transformer_forward.9} parent=1 // pred_fallthru
      _
    // Predicated region
    $region42: #{intra_transformer_forward.9} parent=1 // pred_check
      _
    $region43: #{intra_transformer_forward.9} parent=1 // pred_check_branch
      %694 = sbr.rel (0) target = $region45
    $region44: #{intra_transformer_forward.9} parent=1 // pred_region
      _
    $region45: #{intra_transformer_forward.9} parent=1 // pred_fallthru
      _
    %695 = vsyncpa [#allocation3], 1
    %696 = vsyncpa [#allocation5], 1

// kernel: intra_transformer_forward.13
$region0: #{intra_transformer_forward.13}
  #allocation0 [shape = 'u32[]', space=smem, size = 0x4, offset = 0x4, fixed_abs, tag = 'smem constant byte address 0x4 - core index']
  #allocation1 [shape = 'u32[72,128]{1,0:T(1,128)}', space=vmem, size = 0x9000, scoped, tag = 'internal scratch']
  %s0 = inlined_call_operand.vmem [shape: f32[32,128], index: 0, kind: input, shape index: {}]
  %s1 = inlined_call_operand.vmem [shape: f32[1,128], index: 1, kind: input, shape index: {}]
  %s2 = inlined_call_operand.vmem [shape: f32[1,128], index: 2, kind: input, shape index: {}]
  %s3 = inlined_call_operand.hbm [shape: f32[32,128], index: 3, kind: output, shape index: {}]
  %s4 = sld [smem:[#allocation0]]
  $region22: #{intra_transformer_forward.13} parent=0
    _
  %s6 = ssub.s32 1, %s4
  %s7 = scalar_select 0, %s6, %s4
  $region1: #{intra_transformer_forward.13} parent=0
    #allocation2 [shape = 'u8[16384]{0}', space=vmem, size = 0x4000, scoped, tag = 'output window, operand 0, single buffered']
    #allocation3 [shape = 's32[1]{0}', space=sflag, size = 0x4, scoped, tag = 'scoped memory for intra_transformer_forward.13']
    %8 = vsyncpa [#allocation3], 0
    // Predicated region
    $region2: #{intra_transformer_forward.13} parent=1 // pred_check
      _
    $region3: #{intra_transformer_forward.13} parent=1 // pred_check_branch
      %10 = sbr.rel (0) target = $region5
    $region4: #{intra_transformer_forward.13} parent=1 // pred_region
      _
    $region5: #{intra_transformer_forward.13} parent=1 // pred_fallthru
      _
    // Predicated region
    $region6: #{intra_transformer_forward.13} parent=1 // pred_check
      _
    $region7: #{intra_transformer_forward.13} parent=1 // pred_check_branch
      %12 = sbr.rel (0) target = $region9
    $region8: #{intra_transformer_forward.13} parent=1 // pred_region
      _
    $region9: #{intra_transformer_forward.13} parent=1 // pred_fallthru
      _
    // Predicated region
    $region10: #{intra_transformer_forward.13} parent=1 // pred_check
      _
    $region11: #{intra_transformer_forward.13} parent=1 // pred_check_branch
      %14 = sbr.rel (0) target = $region13
    $region12: #{intra_transformer_forward.13} parent=1 // pred_region
      _
    $region13: #{intra_transformer_forward.13} parent=1 // pred_fallthru
      _
    %v15 = vld [vmem:[%s0] sm:$0xff]
    %v16 = vld [vmem:[%s0 + $0x8] sm:$0xff]
    %v17 = vld [vmem:[%s0 + $0x10] sm:$0xff]
    %v18 = vld [vmem:[%s0 + $0x18] sm:$0xff]
    %19 = vadd.xlane.f32.xlu0 %v15
    %v20 = vpop.xlane.xlu0 %19
    %21 = vadd.xlane.f32.xlu0 %v16
    %v22 = vpop.xlane.xlu0 %21
    %23 = vadd.xlane.f32.xlu0 %v17
    %v24 = vpop.xlane.xlu0 %23
    %25 = vadd.xlane.f32.xlu0 %v18
    %v26 = vpop.xlane.xlu0 %25
    %v27 = vrcp.pop 128.0
    %v28 = vmul.f32 128.0, %v27
    %v29 = vsub.f32 1.0, %v28
    %v30 = vmul.f32 %v27, %v29
    %v31 = vadd.f32 %v27, %v30
    %vm32 = vweird.f32 %v27
    %v33 = vsel %vm32, %v27, %v31
    %v34 = vmul.f32 %v20, %v33
    %v35 = vmul.f32 %v22, %v33
    %v36 = vmul.f32 %v24, %v33
    %v37 = vmul.f32 %v26, %v33
    %v38 = vsub.f32 %v15, %v34
    %v39 = vsub.f32 %v16, %v35
    %v40 = vsub.f32 %v17, %v36
    %v41 = vsub.f32 %v18, %v37
    %v42 = vmul.f32 %v38, %v38
    %v43 = vmul.f32 %v39, %v39
    %v44 = vmul.f32 %v40, %v40
    %v45 = vmul.f32 %v41, %v41
    %46 = vadd.xlane.f32.xlu0 %v42
    %v47 = vpop.xlane.xlu0 %46
    %48 = vadd.xlane.f32.xlu0 %v43
    %v49 = vpop.xlane.xlu0 %48
    %50 = vadd.xlane.f32.xlu0 %v44
    %v51 = vpop.xlane.xlu0 %50
    %52 = vadd.xlane.f32.xlu0 %v45
    %v53 = vpop.xlane.xlu0 %52
    %v54 = vmul.f32 %v47, %v33
    %v55 = vmul.f32 %v49, %v33
    %v56 = vmul.f32 %v51, %v33
    %v57 = vmul.f32 %v53, %v33
    %v58 = vadd.f32 %v54, 1e-06
    %v59 = vadd.f32 %v55, 1e-06
    %v60 = vadd.f32 %v56, 1e-06
    %v61 = vadd.f32 %v57, 1e-06
    %v62 = vrsqrt.pop %v58
    %v63 = vmul.f32 %v62, %v58
    %v64 = vmul.f32 %v63, %v62
    %v65 = vmul.f32 0.5, %v64
    %v66 = vsub.f32 1.5, %v65
    %v67 = vmul.f32 %v62, %v66
    %vm68 = vweird.f32 %v58
    %vm69 = vweird.f32 %v62
    %vm70 = vmor %vm68, %vm69
    %v71 = vsel %vm70, %v62, %v67
    %v72 = vrsqrt.pop %v59
    %v73 = vmul.f32 %v72, %v59
    %v74 = vmul.f32 %v73, %v72
    %v75 = vmul.f32 0.5, %v74
    %v76 = vsub.f32 1.5, %v75
    %v77 = vmul.f32 %v72, %v76
    %vm78 = vweird.f32 %v59
    %vm79 = vweird.f32 %v72
    %vm80 = vmor %vm78, %vm79
    %v81 = vsel %vm80, %v72, %v77
    %v82 = vrsqrt.pop %v60
    %v83 = vmul.f32 %v82, %v60
    %v84 = vmul.f32 %v83, %v82
    %v85 = vmul.f32 0.5, %v84
    %v86 = vsub.f32 1.5, %v85
    %v87 = vmul.f32 %v82, %v86
    %vm88 = vweird.f32 %v60
    %vm89 = vweird.f32 %v82
    %vm90 = vmor %vm88, %vm89
    %v91 = vsel %vm90, %v82, %v87
    %v92 = vrsqrt.pop %v61
    %v93 = vmul.f32 %v92, %v61
    %v94 = vmul.f32 %v93, %v92
    %v95 = vmul.f32 0.5, %v94
    %v96 = vsub.f32 1.5, %v95
    %v97 = vmul.f32 %v92, %v96
    %vm98 = vweird.f32 %v61
    %vm99 = vweird.f32 %v92
    %vm100 = vmor %vm98, %vm99
    %v101 = vsel %vm100, %v92, %v97
    %v102 = vmul.f32 %v38, %v71
    %v103 = vmul.f32 %v39, %v81
    %v104 = vmul.f32 %v40, %v91
    %v105 = vmul.f32 %v41, %v101
    %v106 = vld [vmem:[%s1] sm:$0x1]
    %v108 = vperm.slane %v106, 0
    %v110 = vmul.f32 %v102, %v108
    %v111 = vmul.f32 %v103, %v108
    %v112 = vmul.f32 %v104, %v108
    %v113 = vmul.f32 %v105, %v108
    %v114 = vld [vmem:[%s2] sm:$0x1]
    %v116 = vperm.slane %v114, 0
    %v118 = vadd.f32 %v110, %v116
    %v119 = vadd.f32 %v111, %v116
    %v120 = vadd.f32 %v112, %v116
    %v121 = vadd.f32 %v113, %v116
    %122 = vst [vmem:[#allocation2] sm:$0xff] %v118
    %123 = vst [vmem:[#allocation2 + $0x8] sm:$0xff] %v119
    %124 = vst [vmem:[#allocation2 + $0x10] sm:$0xff] %v120
    %125 = vst [vmem:[#allocation2 + $0x18] sm:$0xff] %v121
    // Predicated region
    $region14: #{intra_transformer_forward.13} parent=1 // pred_check
      _
    $region15: #{intra_transformer_forward.13} parent=1 // pred_check_branch
      %127 = sbr.rel (0) target = $region17
    $region16: #{intra_transformer_forward.13} parent=1 // pred_region
      %129 = vsyncadd [#allocation3], 0
      %s130 = sshll.u32 [#allocation2], 4
      %s131 = int_to_ptr.vmem [resolvable:$true] %s130
      %s132 = sshll.u32 %s3, 4
      %s133 = int_to_ptr.hbm [resolvable:$true] %s132
      %138 = dma.vmem_to_hbm [thread:$0]  %s131, 512, %s133, [#allocation3], 128, 128, 8
    $region17: #{intra_transformer_forward.13} parent=1 // pred_fallthru
      _
    // Predicated region
    $region18: #{intra_transformer_forward.13} parent=1 // pred_check
      _
    $region19: #{intra_transformer_forward.13} parent=1 // pred_check_branch
      %140 = sbr.rel (0) target = $region21
    $region20: #{intra_transformer_forward.13} parent=1 // pred_region
      %142 = dma.done [#allocation3], 512
    $region21: #{intra_transformer_forward.13} parent=1 // pred_fallthru
      _
    %143 = vsyncpa [#allocation3], 1

</llo_original>
